<compile_context>
chip_gen: v6e
topology: v6e:2x2x1
jax: 0.10.0
libtpu: 0.0.40
codegen_flags: <defaults>
</compile_context>

<pallas_src>
import functools
import math

import jax
import jax.numpy as jnp
from jax import lax
from jax.experimental import pallas as pl
from jax.experimental.pallas import tpu as pltpu

MXU_DTYPE = jnp.bfloat16   # matmul-operand dtype (f32 accumulation everywhere)
LN_EPS = 1e-5              # torch.nn.LayerNorm default


def _block_kernel(x_ref, g1_ref, b1_ref, wqkv_ref, bqkv_ref, wp_ref, bp_ref,
                  g2_ref, b2_ref, w1_ref, bfc1_ref, w2_ref, bfc2_ref, o_ref,
                  *, num_heads, eps):
    B, T, C = x_ref.shape
    H = num_heads
    hd = C // H
    N = B * T

    # Collapse batch: all projections / MLP matmuls run once over B*T rows.
    x = x_ref[...].astype(jnp.float32).reshape(N, C)                  # (N, C)

    # ---- LayerNorm 1 (f32, VPU/EUP) ----
    mu1 = jnp.mean(x, axis=-1, keepdims=True)
    xc = x - mu1
    var1 = jnp.mean(xc * xc, axis=-1, keepdims=True)
    ln1 = xc * lax.rsqrt(var1 + eps) * g1_ref[...] + b1_ref[...]      # (N, C)

    # ---- fused Q/K/V projection (one MXU matmul; 1/sqrt(hd) pre-folded into Wq/bq) ----
    qkv = jnp.dot(ln1.astype(MXU_DTYPE), wqkv_ref[...],
                  preferred_element_type=jnp.float32) + bqkv_ref[...]  # (N, 3C)
    q = qkv[:, 0 * C:1 * C]
    k = qkv[:, 1 * C:2 * C]
    v = qkv[:, 2 * C:3 * C]

    # ---- head-batched causal attention over all (batch, head) pairs ----
    def split_heads(m):
        # (N, C) -> (B*H, T, hd) using static slices + a leading-dim stack
        # (avoids 4-D transposes / lane-dim reshapes).
        blocks = [m[b * T:(b + 1) * T, h * hd:(h + 1) * hd]
                  for b in range(B) for h in range(H)]
        return jnp.stack(blocks, axis=0)

    q3 = split_heads(q).astype(MXU_DTYPE)                              # (BH, T, hd)
    k3 = split_heads(k).astype(MXU_DTYPE)
    v3 = split_heads(v).astype(MXU_DTYPE)

    s = jnp.einsum('ntd,nsd->nts', q3, k3,
                   preferred_element_type=jnp.float32)                 # (BH, T, T)

    row = lax.broadcasted_iota(jnp.int32, (T, T), 0)
    col = lax.broadcasted_iota(jnp.int32, (T, T), 1)
    causal = (row >= col)[None, :, :]
    s = jnp.where(causal, s, -jnp.inf)

    # Numerically stable softmax; every row has the diagonal unmasked, so no
    # fully -inf rows here.  (If kv_cache / valid_context_lengths masking were
    # added, the denominator would need a guard against fully-masked rows.)
    s_max = jnp.max(s, axis=-1, keepdims=True)
    p = jnp.exp(s - s_max)
    denom = jnp.sum(p, axis=-1, keepdims=True)
    p = p * pl.reciprocal(denom, approx=True)                          # EUP divide

    y3 = jnp.einsum('nts,nsd->ntd', p.astype(MXU_DTYPE), v3,
                    preferred_element_type=jnp.float32)                # (BH, T, hd)

    # Merge heads back to (N, C):  'b h t e -> b t (h e)'
    rows = []
    for b in range(B):
        rows.append(jnp.concatenate([y3[b * H + h] for h in range(H)], axis=-1))
    y = jnp.concatenate(rows, axis=0)                                  # (N, C)

    # ---- output projection + residual ----
    attn_out = jnp.dot(y.astype(MXU_DTYPE), wp_ref[...],
                       preferred_element_type=jnp.float32) + bp_ref[...]
    h1 = x + attn_out                                                  # (N, C)

    # ---- LayerNorm 2 ----
    mu2 = jnp.mean(h1, axis=-1, keepdims=True)
    hc = h1 - mu2
    var2 = jnp.mean(hc * hc, axis=-1, keepdims=True)
    ln2 = hc * lax.rsqrt(var2 + eps) * g2_ref[...] + b2_ref[...]

    # ---- MLP: Linear(C,4C) -> GELU(tanh) -> Linear(4C,C)  (dropout = identity) ----
    hid = jnp.dot(ln2.astype(MXU_DTYPE), w1_ref[...],
                  preferred_element_type=jnp.float32) + bfc1_ref[...]  # (N, 4C)
    c0 = 0.7978845608028654  # sqrt(2/pi)
    hid = 0.5 * hid * (1.0 + jnp.tanh(c0 * (hid + 0.044715 * hid * hid * hid)))
    mlp_out = jnp.dot(hid.astype(MXU_DTYPE), w2_ref[...],
                      preferred_element_type=jnp.float32) + bfc2_ref[...]

    out = h1 + mlp_out
    o_ref[...] = out.reshape(B, T, C).astype(o_ref.dtype)


def pack_params(raw, num_heads):
    """Host-side packing: fuse QKV, fold the 1/sqrt(hd) scale into Wq/bq, cast
    matmul weights to bf16 (biases / LN params stay f32)."""
    C = raw["wq"].shape[0]
    hd = C // num_heads
    scale = jnp.float32(1.0 / math.sqrt(hd))
    w_qkv = jnp.concatenate([raw["wq"] * scale, raw["wk"], raw["wv"]], axis=1)
    b_qkv = jnp.concatenate([raw["bq"] * scale, raw["bk"], raw["bv"]], axis=1)
    f32 = jnp.float32
    return {
        "ln1_g": raw["ln1_g"].astype(f32), "ln1_b": raw["ln1_b"].astype(f32),
        "w_qkv": w_qkv.astype(MXU_DTYPE),  "b_qkv": b_qkv.astype(f32),
        "w_proj": raw["wp"].astype(MXU_DTYPE), "b_proj": raw["bp"].astype(f32),
        "ln2_g": raw["ln2_g"].astype(f32), "ln2_b": raw["ln2_b"].astype(f32),
        "w_fc1": raw["w_fc1"].astype(MXU_DTYPE), "b_fc1": raw["b_fc1"].astype(f32),
        "w_fc2": raw["w_fc2"].astype(MXU_DTYPE), "b_fc2": raw["b_fc2"].astype(f32),
    }


def block_forward(x, p, num_heads):
    """x: (B, T, C) float32. p: packed params from pack_params."""
    B, T, C = x.shape
    assert C % num_heads == 0

    operands = (x, p["ln1_g"], p["ln1_b"], p["w_qkv"], p["b_qkv"],
                p["w_proj"], p["b_proj"], p["ln2_g"], p["ln2_b"],
                p["w_fc1"], p["b_fc1"], p["w_fc2"], p["b_fc2"])

    def full_spec(a):
        zeros = (0,) * a.ndim
        return pl.BlockSpec(a.shape, lambda i, _z=zeros: _z)

    kernel = functools.partial(_block_kernel, num_heads=num_heads, eps=LN_EPS)

    return pl.pallas_call(
        kernel,
        out_shape=jax.ShapeDtypeStruct((B, T, C), x.dtype),
        grid_spec=pltpu.PrefetchScalarGridSpec(
            num_scalar_prefetch=0,
            grid=(1,),                       # single invocation: whole batch in VMEM
            in_specs=[full_spec(a) for a in operands],
            out_specs=pl.BlockSpec((B, T, C), lambda i: (0, 0, 0)),
        ),
        compiler_params=pltpu.CompilerParams(
            dimension_semantics=("arbitrary",),
        ),
    )(*operands)


def reference_forward(x, p, num_heads):
    """Pure-JAX mirror of Block.forward (eval mode, no kv_cache, no GRU gating),
    using the same packed mixed-precision weights as the kernel (bf16 matmul
    operands, f32 accumulation / elementwise)."""
    B, T, C = x.shape
    H = num_heads
    hd = C // H
    x32 = x.astype(jnp.float32)

    def layer_norm(v, g, b):
        mu = jnp.mean(v, axis=-1, keepdims=True)
        vc = v - mu
        var = jnp.mean(vc * vc, axis=-1, keepdims=True)
        return vc / jnp.sqrt(var + LN_EPS) * g + b

    def mm(a, w):
        return jnp.dot(a.astype(MXU_DTYPE), w.astype(MXU_DTYPE),
                       preferred_element_type=jnp.float32)

    ln1 = layer_norm(x32.reshape(B * T, C), p["ln1_g"], p["ln1_b"])
    qkv = mm(ln1, p["w_qkv"]) + p["b_qkv"]
    q, k, v = qkv[:, :C], qkv[:, C:2 * C], qkv[:, 2 * C:]

    def heads(m):
        return m.reshape(B, T, H, hd).transpose(0, 2, 1, 3)           # (B,H,T,hd)

    qh, kh, vh = heads(q), heads(k), heads(v)
    att = jnp.einsum("bhtd,bhsd->bhts", qh.astype(MXU_DTYPE), kh.astype(MXU_DTYPE),
                     preferred_element_type=jnp.float32)
    mask = jnp.tril(jnp.ones((T, T), dtype=bool))
    att = jnp.where(mask[None, None], att, -jnp.inf)
    att = jax.nn.softmax(att, axis=-1)
    y = jnp.einsum("bhts,bhsd->bhtd", att.astype(MXU_DTYPE), vh.astype(MXU_DTYPE),
                   preferred_element_type=jnp.float32)
    y = y.transpose(0, 2, 1, 3).reshape(B * T, C)

    attn_out = mm(y, p["w_proj"]) + p["b_proj"]
    h1 = x32.reshape(B * T, C) + attn_out

    ln2 = layer_norm(h1, p["ln2_g"], p["ln2_b"])
    hid = mm(ln2, p["w_fc1"]) + p["b_fc1"]
    c0 = 0.7978845608028654
    hid = 0.5 * hid * (1.0 + jnp.tanh(c0 * (hid + 0.044715 * hid * hid * hid)))
    mlp_out = mm(hid, p["w_fc2"]) + p["b_fc2"]
    return (h1 + mlp_out).reshape(B, T, C)


if __name__ == "__main__":
    # tokens_per_block=2, max_blocks=4 -> max_tokens=8; embed_dim=32, 4 heads.
    B, T, C, NUM_HEADS = 2, 8, 32, 4

    key = jax.random.PRNGKey(0)
    ks = jax.random.split(key, 17)
    w_scale = 1.0 / math.sqrt(C)

    raw = {
        "ln1_g": 1.0 + 0.1 * jax.random.normal(ks[0], (1, C), jnp.float32),
        "ln1_b": 0.05 * jax.random.normal(ks[1], (1, C), jnp.float32),
        "wq": jax.random.normal(ks[2], (C, C), jnp.float32) * w_scale,
        "bq": 0.01 * jax.random.normal(ks[3], (1, C), jnp.float32),
        "wk": jax.random.normal(ks[4], (C, C), jnp.float32) * w_scale,
        "bk": 0.01 * jax.random.normal(ks[5], (1, C), jnp.float32),
        "wv": jax.random.normal(ks[6], (C, C), jnp.float32) * w_scale,
        "bv": 0.01 * jax.random.normal(ks[7], (1, C), jnp.float32),
        "wp": jax.random.normal(ks[8], (C, C), jnp.float32) * w_scale,
        "bp": 0.01 * jax.random.normal(ks[9], (1, C), jnp.float32),
        "ln2_g": 1.0 + 0.1 * jax.random.normal(ks[10], (1, C), jnp.float32),
        "ln2_b": 0.05 * jax.random.normal(ks[11], (1, C), jnp.float32),
        "w_fc1": jax.random.normal(ks[12], (C, 4 * C), jnp.float32) * w_scale,
        "b_fc1": 0.01 * jax.random.normal(ks[13], (1, 4 * C), jnp.float32),
        "w_fc2": jax.random.normal(ks[14], (4 * C, C), jnp.float32) / math.sqrt(4 * C),
        "b_fc2": 0.01 * jax.random.normal(ks[15], (1, C), jnp.float32),
    }
    x = jax.random.normal(ks[16], (B, T, C), jnp.float32)

    params = pack_params(raw, NUM_HEADS)

    out = block_forward(x, params, NUM_HEADS)
    out = jax.block_until_ready(out)

    ref = reference_forward(x, params, NUM_HEADS)
    assert out.shape == (B, T, C)
    # Tolerance covers the only intended deviations: approx EUP reciprocal in the
    # softmax and MXU accumulation-order differences (both << 1e-2).
    assert jnp.allclose(out, ref, atol=2e-2, rtol=2e-2), "mismatch vs reference"

    # TODO(synk): kv_cache / valid_context_lengths inference masking and the
    # gru_gating branch (GRUGatingUnit) are not implemented; only the standard
    # causal eval-mode forward (gru_gating=False, dropout=identity) is covered.
    print("KERNEL_OK")
</pallas_src>

<mosaic_0001>
module attributes {stable_mosaic.version = 11 : i64} {
  func.func @_block_kernel(%arg0: i32, %arg1: memref<2x8x32xf32, #tpu.memory_space<vmem>>, %arg2: memref<1x32xf32, #tpu.memory_space<vmem>>, %arg3: memref<1x32xf32, #tpu.memory_space<vmem>>, %arg4: memref<32x96xbf16, #tpu.memory_space<vmem>>, %arg5: memref<1x96xf32, #tpu.memory_space<vmem>>, %arg6: memref<32x32xbf16, #tpu.memory_space<vmem>>, %arg7: memref<1x32xf32, #tpu.memory_space<vmem>>, %arg8: memref<1x32xf32, #tpu.memory_space<vmem>>, %arg9: memref<1x32xf32, #tpu.memory_space<vmem>>, %arg10: memref<32x128xbf16, #tpu.memory_space<vmem>>, %arg11: memref<1x128xf32, #tpu.memory_space<vmem>>, %arg12: memref<128x32xbf16, #tpu.memory_space<vmem>>, %arg13: memref<1x32xf32, #tpu.memory_space<vmem>>, %arg14: memref<2x8x32xf32, #tpu.memory_space<vmem>>) attributes {dimension_semantics = [#tpu.dimension_semantics<arbitrary>], iteration_bounds = array<i64: 1>, scalar_prefetch = 0 : i64, scratch_operands = 0 : i64, tpu.core_type = #tpu.core_type<tc>, window_params = [{pipeline_mode = #tpu.pipeline_mode<synchronous>, transform_indices = @transform_0, window_bounds = array<i64: 2, 8, 32>}, {pipeline_mode = #tpu.pipeline_mode<synchronous>, transform_indices = @transform_1, window_bounds = array<i64: 1, 32>}, {pipeline_mode = #tpu.pipeline_mode<synchronous>, transform_indices = @transform_2, window_bounds = array<i64: 1, 32>}, {pipeline_mode = #tpu.pipeline_mode<synchronous>, transform_indices = @transform_3, window_bounds = array<i64: 32, 96>}, {pipeline_mode = #tpu.pipeline_mode<synchronous>, transform_indices = @transform_4, window_bounds = array<i64: 1, 96>}, {pipeline_mode = #tpu.pipeline_mode<synchronous>, transform_indices = @transform_5, window_bounds = array<i64: 32, 32>}, {pipeline_mode = #tpu.pipeline_mode<synchronous>, transform_indices = @transform_6, window_bounds = array<i64: 1, 32>}, {pipeline_mode = #tpu.pipeline_mode<synchronous>, transform_indices = @transform_7, window_bounds = array<i64: 1, 32>}, {pipeline_mode = #tpu.pipeline_mode<synchronous>, transform_indices = @transform_8, window_bounds = array<i64: 1, 32>}, {pipeline_mode = #tpu.pipeline_mode<synchronous>, transform_indices = @transform_9, window_bounds = array<i64: 32, 128>}, {pipeline_mode = #tpu.pipeline_mode<synchronous>, transform_indices = @transform_10, window_bounds = array<i64: 1, 128>}, {pipeline_mode = #tpu.pipeline_mode<synchronous>, transform_indices = @transform_11, window_bounds = array<i64: 128, 32>}, {pipeline_mode = #tpu.pipeline_mode<synchronous>, transform_indices = @transform_12, window_bounds = array<i64: 1, 32>}, {pipeline_mode = #tpu.pipeline_mode<synchronous>, transform_indices = @transform_13, window_bounds = array<i64: 2, 8, 32>}]} {
    %c0 = arith.constant 0 : index
    %c0_0 = arith.constant 0 : index
    %c0_1 = arith.constant 0 : index
    %0 = vector.load %arg1[%c0, %c0_0, %c0_1] : memref<2x8x32xf32, #tpu.memory_space<vmem>>, vector<2x8x32xf32>
    %1 = vector.shape_cast %0 : vector<2x8x32xf32> to vector<16x32xf32>
    %cst = arith.constant dense<0.000000e+00> : vector<16xf32>
    %2 = vector.multi_reduction <add>, %1, %cst [1] : vector<16x32xf32> to vector<16xf32>
    %3 = vector.shape_cast %2 : vector<16xf32> to vector<16x1xf32>
    %cst_2 = arith.constant 3.200000e+01 : f32
    %4 = vector.broadcast %cst_2 : f32 to vector<16x1xf32>
    %5 = arith.divf %3, %4 : vector<16x1xf32>
    %6 = vector.broadcast %5 : vector<16x1xf32> to vector<16x32xf32>
    %7 = arith.subf %1, %6 : vector<16x32xf32>
    %8 = arith.mulf %7, %7 : vector<16x32xf32>
    %cst_3 = arith.constant dense<0.000000e+00> : vector<16xf32>
    %9 = vector.multi_reduction <add>, %8, %cst_3 [1] : vector<16x32xf32> to vector<16xf32>
    %10 = vector.shape_cast %9 : vector<16xf32> to vector<16x1xf32>
    %cst_4 = arith.constant 3.200000e+01 : f32
    %11 = vector.broadcast %cst_4 : f32 to vector<16x1xf32>
    %12 = arith.divf %10, %11 : vector<16x1xf32>
    %cst_5 = arith.constant 9.99999974E-6 : f32
    %13 = vector.broadcast %cst_5 : f32 to vector<16x1xf32>
    %14 = arith.addf %12, %13 : vector<16x1xf32>
    %15 = math.rsqrt %14 : vector<16x1xf32>
    %16 = vector.broadcast %15 : vector<16x1xf32> to vector<16x32xf32>
    %17 = arith.mulf %7, %16 : vector<16x32xf32>
    %c0_6 = arith.constant 0 : index
    %c0_7 = arith.constant 0 : index
    %18 = vector.load %arg2[%c0_6, %c0_7] : memref<1x32xf32, #tpu.memory_space<vmem>>, vector<1x32xf32>
    %19 = vector.broadcast %18 : vector<1x32xf32> to vector<16x32xf32>
    %20 = arith.mulf %17, %19 : vector<16x32xf32>
    %c0_8 = arith.constant 0 : index
    %c0_9 = arith.constant 0 : index
    %21 = vector.load %arg3[%c0_8, %c0_9] : memref<1x32xf32, #tpu.memory_space<vmem>>, vector<1x32xf32>
    %22 = vector.broadcast %21 : vector<1x32xf32> to vector<16x32xf32>
    %23 = arith.addf %20, %22 : vector<16x32xf32>
    %24 = arith.truncf %23 : vector<16x32xf32> to vector<16x32xbf16>
    %c0_10 = arith.constant 0 : index
    %c0_11 = arith.constant 0 : index
    %25 = vector.load %arg4[%c0_10, %c0_11] : memref<32x96xbf16, #tpu.memory_space<vmem>>, vector<32x96xbf16>
    %cst_12 = arith.constant dense<0.000000e+00> : vector<16x96xf32>
    %26 = tpu.matmul %24, %25, %cst_12 {dimension_numbers = #tpu.dot_dimension_numbers<[1], [0], [0], [1], [0, 0, 1, 1], [], []>} : vector<16x32xbf16>, vector<32x96xbf16>, vector<16x96xf32> -> vector<16x96xf32>
    %c0_13 = arith.constant 0 : index
    %c0_14 = arith.constant 0 : index
    %27 = vector.load %arg5[%c0_13, %c0_14] : memref<1x96xf32, #tpu.memory_space<vmem>>, vector<1x96xf32>
    %28 = vector.broadcast %27 : vector<1x96xf32> to vector<16x96xf32>
    %29 = arith.addf %26, %28 : vector<16x96xf32>
    %30 = vector.extract_strided_slice %29 {offsets = [0, 0], sizes = [16, 32], strides = [1, 1]} : vector<16x96xf32> to vector<16x32xf32>
    %31 = vector.extract_strided_slice %29 {offsets = [0, 32], sizes = [16, 32], strides = [1, 1]} : vector<16x96xf32> to vector<16x32xf32>
    %32 = vector.extract_strided_slice %29 {offsets = [0, 64], sizes = [16, 32], strides = [1, 1]} : vector<16x96xf32> to vector<16x32xf32>
    %33 = vector.extract_strided_slice %30 {offsets = [0, 0], sizes = [8, 8], strides = [1, 1]} : vector<16x32xf32> to vector<8x8xf32>
    %34 = vector.extract_strided_slice %30 {offsets = [0, 8], sizes = [8, 8], strides = [1, 1]} : vector<16x32xf32> to vector<8x8xf32>
    %35 = vector.extract_strided_slice %30 {offsets = [0, 16], sizes = [8, 8], strides = [1, 1]} : vector<16x32xf32> to vector<8x8xf32>
    %36 = vector.extract_strided_slice %30 {offsets = [0, 24], sizes = [8, 8], strides = [1, 1]} : vector<16x32xf32> to vector<8x8xf32>
    %37 = vector.extract_strided_slice %30 {offsets = [8, 0], sizes = [8, 8], strides = [1, 1]} : vector<16x32xf32> to vector<8x8xf32>
    %38 = vector.extract_strided_slice %30 {offsets = [8, 8], sizes = [8, 8], strides = [1, 1]} : vector<16x32xf32> to vector<8x8xf32>
    %39 = vector.extract_strided_slice %30 {offsets = [8, 16], sizes = [8, 8], strides = [1, 1]} : vector<16x32xf32> to vector<8x8xf32>
    %40 = vector.extract_strided_slice %30 {offsets = [8, 24], sizes = [8, 8], strides = [1, 1]} : vector<16x32xf32> to vector<8x8xf32>
    %41 = vector.shape_cast %33 : vector<8x8xf32> to vector<1x8x8xf32>
    %42 = vector.shape_cast %34 : vector<8x8xf32> to vector<1x8x8xf32>
    %43 = vector.shape_cast %35 : vector<8x8xf32> to vector<1x8x8xf32>
    %44 = vector.shape_cast %36 : vector<8x8xf32> to vector<1x8x8xf32>
    %45 = vector.shape_cast %37 : vector<8x8xf32> to vector<1x8x8xf32>
    %46 = vector.shape_cast %38 : vector<8x8xf32> to vector<1x8x8xf32>
    %47 = vector.shape_cast %39 : vector<8x8xf32> to vector<1x8x8xf32>
    %48 = vector.shape_cast %40 : vector<8x8xf32> to vector<1x8x8xf32>
    %49 = tpu.concatenate %41, %42, %43, %44, %45, %46, %47, %48 in 0 : vector<1x8x8xf32>, vector<1x8x8xf32>, vector<1x8x8xf32>, vector<1x8x8xf32>, vector<1x8x8xf32>, vector<1x8x8xf32>, vector<1x8x8xf32>, vector<1x8x8xf32> -> vector<8x8x8xf32>
    %50 = arith.truncf %49 : vector<8x8x8xf32> to vector<8x8x8xbf16>
    %51 = vector.extract_strided_slice %31 {offsets = [0, 0], sizes = [8, 8], strides = [1, 1]} : vector<16x32xf32> to vector<8x8xf32>
    %52 = vector.extract_strided_slice %31 {offsets = [0, 8], sizes = [8, 8], strides = [1, 1]} : vector<16x32xf32> to vector<8x8xf32>
    %53 = vector.extract_strided_slice %31 {offsets = [0, 16], sizes = [8, 8], strides = [1, 1]} : vector<16x32xf32> to vector<8x8xf32>
    %54 = vector.extract_strided_slice %31 {offsets = [0, 24], sizes = [8, 8], strides = [1, 1]} : vector<16x32xf32> to vector<8x8xf32>
    %55 = vector.extract_strided_slice %31 {offsets = [8, 0], sizes = [8, 8], strides = [1, 1]} : vector<16x32xf32> to vector<8x8xf32>
    %56 = vector.extract_strided_slice %31 {offsets = [8, 8], sizes = [8, 8], strides = [1, 1]} : vector<16x32xf32> to vector<8x8xf32>
    %57 = vector.extract_strided_slice %31 {offsets = [8, 16], sizes = [8, 8], strides = [1, 1]} : vector<16x32xf32> to vector<8x8xf32>
    %58 = vector.extract_strided_slice %31 {offsets = [8, 24], sizes = [8, 8], strides = [1, 1]} : vector<16x32xf32> to vector<8x8xf32>
    %59 = vector.shape_cast %51 : vector<8x8xf32> to vector<1x8x8xf32>
    %60 = vector.shape_cast %52 : vector<8x8xf32> to vector<1x8x8xf32>
    %61 = vector.shape_cast %53 : vector<8x8xf32> to vector<1x8x8xf32>
    %62 = vector.shape_cast %54 : vector<8x8xf32> to vector<1x8x8xf32>
    %63 = vector.shape_cast %55 : vector<8x8xf32> to vector<1x8x8xf32>
    %64 = vector.shape_cast %56 : vector<8x8xf32> to vector<1x8x8xf32>
    %65 = vector.shape_cast %57 : vector<8x8xf32> to vector<1x8x8xf32>
    %66 = vector.shape_cast %58 : vector<8x8xf32> to vector<1x8x8xf32>
    %67 = tpu.concatenate %59, %60, %61, %62, %63, %64, %65, %66 in 0 : vector<1x8x8xf32>, vector<1x8x8xf32>, vector<1x8x8xf32>, vector<1x8x8xf32>, vector<1x8x8xf32>, vector<1x8x8xf32>, vector<1x8x8xf32>, vector<1x8x8xf32> -> vector<8x8x8xf32>
    %68 = arith.truncf %67 : vector<8x8x8xf32> to vector<8x8x8xbf16>
    %69 = vector.extract_strided_slice %32 {offsets = [0, 0], sizes = [8, 8], strides = [1, 1]} : vector<16x32xf32> to vector<8x8xf32>
    %70 = vector.extract_strided_slice %32 {offsets = [0, 8], sizes = [8, 8], strides = [1, 1]} : vector<16x32xf32> to vector<8x8xf32>
    %71 = vector.extract_strided_slice %32 {offsets = [0, 16], sizes = [8, 8], strides = [1, 1]} : vector<16x32xf32> to vector<8x8xf32>
    %72 = vector.extract_strided_slice %32 {offsets = [0, 24], sizes = [8, 8], strides = [1, 1]} : vector<16x32xf32> to vector<8x8xf32>
    %73 = vector.extract_strided_slice %32 {offsets = [8, 0], sizes = [8, 8], strides = [1, 1]} : vector<16x32xf32> to vector<8x8xf32>
    %74 = vector.extract_strided_slice %32 {offsets = [8, 8], sizes = [8, 8], strides = [1, 1]} : vector<16x32xf32> to vector<8x8xf32>
    %75 = vector.extract_strided_slice %32 {offsets = [8, 16], sizes = [8, 8], strides = [1, 1]} : vector<16x32xf32> to vector<8x8xf32>
    %76 = vector.extract_strided_slice %32 {offsets = [8, 24], sizes = [8, 8], strides = [1, 1]} : vector<16x32xf32> to vector<8x8xf32>
    %77 = vector.shape_cast %69 : vector<8x8xf32> to vector<1x8x8xf32>
    %78 = vector.shape_cast %70 : vector<8x8xf32> to vector<1x8x8xf32>
    %79 = vector.shape_cast %71 : vector<8x8xf32> to vector<1x8x8xf32>
    %80 = vector.shape_cast %72 : vector<8x8xf32> to vector<1x8x8xf32>
    %81 = vector.shape_cast %73 : vector<8x8xf32> to vector<1x8x8xf32>
    %82 = vector.shape_cast %74 : vector<8x8xf32> to vector<1x8x8xf32>
    %83 = vector.shape_cast %75 : vector<8x8xf32> to vector<1x8x8xf32>
    %84 = vector.shape_cast %76 : vector<8x8xf32> to vector<1x8x8xf32>
    %85 = tpu.concatenate %77, %78, %79, %80, %81, %82, %83, %84 in 0 : vector<1x8x8xf32>, vector<1x8x8xf32>, vector<1x8x8xf32>, vector<1x8x8xf32>, vector<1x8x8xf32>, vector<1x8x8xf32>, vector<1x8x8xf32>, vector<1x8x8xf32> -> vector<8x8x8xf32>
    %86 = arith.truncf %85 : vector<8x8x8xf32> to vector<8x8x8xbf16>
    "tpu.trace_start"() <{level = 10 : i32, message = "ntd,nsd->nts"}> : () -> ()
    %cst_15 = arith.constant dense<0.000000e+00> : vector<8x8x8xf32>
    %87 = tpu.matmul %50, %68, %cst_15 {dimension_numbers = #tpu.dot_dimension_numbers<[2], [2], [1], [1], [0, 0, 0, 1, 1, 1], [0], [0]>} : vector<8x8x8xbf16>, vector<8x8x8xbf16>, vector<8x8x8xf32> -> vector<8x8x8xf32>
    "tpu.trace_stop"() : () -> ()
    %88 = tpu.iota {dimensions = array<i32: 0>} : vector<8x8xi32>
    %89 = tpu.iota {dimensions = array<i32: 1>} : vector<8x8xi32>
    %90 = arith.cmpi sge, %88, %89 : vector<8x8xi32>
    %91 = vector.shape_cast %90 : vector<8x8xi1> to vector<1x8x8xi1>
    %cst_16 = arith.constant 0xFF800000 : f32
    %92 = vector.shape_cast %91 : vector<1x8x8xi1> to vector<1x8x8xi1>
    %93 = vector.broadcast %92 : vector<1x8x8xi1> to vector<8x8x8xi1>
    %94 = vector.broadcast %cst_16 : f32 to vector<8x8x8xf32>
    %95 = arith.select %93, %87, %94 : vector<8x8x8xi1>, vector<8x8x8xf32>
    %cst_17 = arith.constant dense<0xFF800000> : vector<8x8xf32>
    %96 = vector.multi_reduction <maximumf>, %95, %cst_17 [2] : vector<8x8x8xf32> to vector<8x8xf32>
    %97 = vector.shape_cast %96 : vector<8x8xf32> to vector<8x8x1xf32>
    %98 = vector.broadcast %97 : vector<8x8x1xf32> to vector<8x8x8xf32>
    %99 = arith.subf %95, %98 : vector<8x8x8xf32>
    %100 = math.exp %99 : vector<8x8x8xf32>
    %cst_18 = arith.constant dense<0.000000e+00> : vector<8x8xf32>
    %101 = vector.multi_reduction <add>, %100, %cst_18 [2] : vector<8x8x8xf32> to vector<8x8xf32>
    %102 = vector.shape_cast %101 : vector<8x8xf32> to vector<8x8x1xf32>
    %103 = tpu.reciprocal %102 {approx = true} : vector<8x8x1xf32> -> vector<8x8x1xf32>
    %104 = vector.broadcast %103 : vector<8x8x1xf32> to vector<8x8x8xf32>
    %105 = arith.mulf %100, %104 : vector<8x8x8xf32>
    %106 = arith.truncf %105 : vector<8x8x8xf32> to vector<8x8x8xbf16>
    "tpu.trace_start"() <{level = 10 : i32, message = "nts,nsd->ntd"}> : () -> ()
    %cst_19 = arith.constant dense<0.000000e+00> : vector<8x8x8xf32>
    %107 = tpu.matmul %106, %86, %cst_19 {dimension_numbers = #tpu.dot_dimension_numbers<[2], [1], [1], [2], [0, 0, 0, 1, 1, 2], [0], [0]>} : vector<8x8x8xbf16>, vector<8x8x8xbf16>, vector<8x8x8xf32> -> vector<8x8x8xf32>
    "tpu.trace_stop"() : () -> ()
    %108 = vector.extract_strided_slice %107 {offsets = [0, 0, 0], sizes = [1, 8, 8], strides = [1, 1, 1]} : vector<8x8x8xf32> to vector<1x8x8xf32>
    %109 = vector.shape_cast %108 : vector<1x8x8xf32> to vector<8x8xf32>
    %110 = vector.extract_strided_slice %107 {offsets = [1, 0, 0], sizes = [1, 8, 8], strides = [1, 1, 1]} : vector<8x8x8xf32> to vector<1x8x8xf32>
    %111 = vector.shape_cast %110 : vector<1x8x8xf32> to vector<8x8xf32>
    %112 = vector.extract_strided_slice %107 {offsets = [2, 0, 0], sizes = [1, 8, 8], strides = [1, 1, 1]} : vector<8x8x8xf32> to vector<1x8x8xf32>
    %113 = vector.shape_cast %112 : vector<1x8x8xf32> to vector<8x8xf32>
    %114 = vector.extract_strided_slice %107 {offsets = [3, 0, 0], sizes = [1, 8, 8], strides = [1, 1, 1]} : vector<8x8x8xf32> to vector<1x8x8xf32>
    %115 = vector.shape_cast %114 : vector<1x8x8xf32> to vector<8x8xf32>
    %116 = tpu.concatenate %109, %111, %113, %115 in 1 : vector<8x8xf32>, vector<8x8xf32>, vector<8x8xf32>, vector<8x8xf32> -> vector<8x32xf32>
    %117 = vector.extract_strided_slice %107 {offsets = [4, 0, 0], sizes = [1, 8, 8], strides = [1, 1, 1]} : vector<8x8x8xf32> to vector<1x8x8xf32>
    %118 = vector.shape_cast %117 : vector<1x8x8xf32> to vector<8x8xf32>
    %119 = vector.extract_strided_slice %107 {offsets = [5, 0, 0], sizes = [1, 8, 8], strides = [1, 1, 1]} : vector<8x8x8xf32> to vector<1x8x8xf32>
    %120 = vector.shape_cast %119 : vector<1x8x8xf32> to vector<8x8xf32>
    %121 = vector.extract_strided_slice %107 {offsets = [6, 0, 0], sizes = [1, 8, 8], strides = [1, 1, 1]} : vector<8x8x8xf32> to vector<1x8x8xf32>
    %122 = vector.shape_cast %121 : vector<1x8x8xf32> to vector<8x8xf32>
    %123 = vector.extract_strided_slice %107 {offsets = [7, 0, 0], sizes = [1, 8, 8], strides = [1, 1, 1]} : vector<8x8x8xf32> to vector<1x8x8xf32>
    %124 = vector.shape_cast %123 : vector<1x8x8xf32> to vector<8x8xf32>
    %125 = tpu.concatenate %118, %120, %122, %124 in 1 : vector<8x8xf32>, vector<8x8xf32>, vector<8x8xf32>, vector<8x8xf32> -> vector<8x32xf32>
    %126 = tpu.concatenate %116, %125 in 0 : vector<8x32xf32>, vector<8x32xf32> -> vector<16x32xf32>
    %127 = arith.truncf %126 : vector<16x32xf32> to vector<16x32xbf16>
    %c0_20 = arith.constant 0 : index
    %c0_21 = arith.constant 0 : index
    %128 = vector.load %arg6[%c0_20, %c0_21] : memref<32x32xbf16, #tpu.memory_space<vmem>>, vector<32x32xbf16>
    %cst_22 = arith.constant dense<0.000000e+00> : vector<16x32xf32>
    %129 = tpu.matmul %127, %128, %cst_22 {dimension_numbers = #tpu.dot_dimension_numbers<[1], [0], [0], [1], [0, 0, 1, 1], [], []>} : vector<16x32xbf16>, vector<32x32xbf16>, vector<16x32xf32> -> vector<16x32xf32>
    %c0_23 = arith.constant 0 : index
    %c0_24 = arith.constant 0 : index
    %130 = vector.load %arg7[%c0_23, %c0_24] : memref<1x32xf32, #tpu.memory_space<vmem>>, vector<1x32xf32>
    %131 = vector.broadcast %130 : vector<1x32xf32> to vector<16x32xf32>
    %132 = arith.addf %129, %131 : vector<16x32xf32>
    %133 = arith.addf %1, %132 : vector<16x32xf32>
    %cst_25 = arith.constant dense<0.000000e+00> : vector<16xf32>
    %134 = vector.multi_reduction <add>, %133, %cst_25 [1] : vector<16x32xf32> to vector<16xf32>
    %135 = vector.shape_cast %134 : vector<16xf32> to vector<16x1xf32>
    %cst_26 = arith.constant 3.200000e+01 : f32
    %136 = vector.broadcast %cst_26 : f32 to vector<16x1xf32>
    %137 = arith.divf %135, %136 : vector<16x1xf32>
    %138 = vector.broadcast %137 : vector<16x1xf32> to vector<16x32xf32>
    %139 = arith.subf %133, %138 : vector<16x32xf32>
    %140 = arith.mulf %139, %139 : vector<16x32xf32>
    %cst_27 = arith.constant dense<0.000000e+00> : vector<16xf32>
    %141 = vector.multi_reduction <add>, %140, %cst_27 [1] : vector<16x32xf32> to vector<16xf32>
    %142 = vector.shape_cast %141 : vector<16xf32> to vector<16x1xf32>
    %cst_28 = arith.constant 3.200000e+01 : f32
    %143 = vector.broadcast %cst_28 : f32 to vector<16x1xf32>
    %144 = arith.divf %142, %143 : vector<16x1xf32>
    %cst_29 = arith.constant 9.99999974E-6 : f32
    %145 = vector.broadcast %cst_29 : f32 to vector<16x1xf32>
    %146 = arith.addf %144, %145 : vector<16x1xf32>
    %147 = math.rsqrt %146 : vector<16x1xf32>
    %148 = vector.broadcast %147 : vector<16x1xf32> to vector<16x32xf32>
    %149 = arith.mulf %139, %148 : vector<16x32xf32>
    %c0_30 = arith.constant 0 : index
    %c0_31 = arith.constant 0 : index
    %150 = vector.load %arg8[%c0_30, %c0_31] : memref<1x32xf32, #tpu.memory_space<vmem>>, vector<1x32xf32>
    %151 = vector.broadcast %150 : vector<1x32xf32> to vector<16x32xf32>
    %152 = arith.mulf %149, %151 : vector<16x32xf32>
    %c0_32 = arith.constant 0 : index
    %c0_33 = arith.constant 0 : index
    %153 = vector.load %arg9[%c0_32, %c0_33] : memref<1x32xf32, #tpu.memory_space<vmem>>, vector<1x32xf32>
    %154 = vector.broadcast %153 : vector<1x32xf32> to vector<16x32xf32>
    %155 = arith.addf %152, %154 : vector<16x32xf32>
    %156 = arith.truncf %155 : vector<16x32xf32> to vector<16x32xbf16>
    %c0_34 = arith.constant 0 : index
    %c0_35 = arith.constant 0 : index
    %157 = vector.load %arg10[%c0_34, %c0_35] : memref<32x128xbf16, #tpu.memory_space<vmem>>, vector<32x128xbf16>
    %cst_36 = arith.constant dense<0.000000e+00> : vector<16x128xf32>
    %158 = tpu.matmul %156, %157, %cst_36 {dimension_numbers = #tpu.dot_dimension_numbers<[1], [0], [0], [1], [0, 0, 1, 1], [], []>} : vector<16x32xbf16>, vector<32x128xbf16>, vector<16x128xf32> -> vector<16x128xf32>
    %c0_37 = arith.constant 0 : index
    %c0_38 = arith.constant 0 : index
    %159 = vector.load %arg11[%c0_37, %c0_38] : memref<1x128xf32, #tpu.memory_space<vmem>>, vector<1x128xf32>
    %160 = vector.broadcast %159 : vector<1x128xf32> to vector<16x128xf32>
    %161 = arith.addf %158, %160 : vector<16x128xf32>
    %cst_39 = arith.constant 5.000000e-01 : f32
    %162 = vector.broadcast %cst_39 : f32 to vector<16x128xf32>
    %163 = arith.mulf %162, %161 : vector<16x128xf32>
    %cst_40 = arith.constant 4.471500e-02 : f32
    %164 = vector.broadcast %cst_40 : f32 to vector<16x128xf32>
    %165 = arith.mulf %164, %161 : vector<16x128xf32>
    %166 = arith.mulf %165, %161 : vector<16x128xf32>
    %167 = arith.mulf %166, %161 : vector<16x128xf32>
    %168 = arith.addf %161, %167 : vector<16x128xf32>
    %cst_41 = arith.constant 0.797884583 : f32
    %169 = vector.broadcast %cst_41 : f32 to vector<16x128xf32>
    %170 = arith.mulf %169, %168 : vector<16x128xf32>
    %171 = math.tanh %170 : vector<16x128xf32>
    %cst_42 = arith.constant 1.000000e+00 : f32
    %172 = vector.broadcast %cst_42 : f32 to vector<16x128xf32>
    %173 = arith.addf %172, %171 : vector<16x128xf32>
    %174 = arith.mulf %163, %173 : vector<16x128xf32>
    %175 = arith.truncf %174 : vector<16x128xf32> to vector<16x128xbf16>
    %c0_43 = arith.constant 0 : index
    %c0_44 = arith.constant 0 : index
    %176 = vector.load %arg12[%c0_43, %c0_44] : memref<128x32xbf16, #tpu.memory_space<vmem>>, vector<128x32xbf16>
    %cst_45 = arith.constant dense<0.000000e+00> : vector<16x32xf32>
    %177 = tpu.matmul %175, %176, %cst_45 {dimension_numbers = #tpu.dot_dimension_numbers<[1], [0], [0], [1], [0, 0, 1, 1], [], []>} : vector<16x128xbf16>, vector<128x32xbf16>, vector<16x32xf32> -> vector<16x32xf32>
    %c0_46 = arith.constant 0 : index
    %c0_47 = arith.constant 0 : index
    %178 = vector.load %arg13[%c0_46, %c0_47] : memref<1x32xf32, #tpu.memory_space<vmem>>, vector<1x32xf32>
    %179 = vector.broadcast %178 : vector<1x32xf32> to vector<16x32xf32>
    %180 = arith.addf %177, %179 : vector<16x32xf32>
    %181 = arith.addf %133, %180 : vector<16x32xf32>
    %182 = vector.shape_cast %181 : vector<16x32xf32> to vector<2x8x32xf32>
    %c0_48 = arith.constant 0 : index
    %c0_49 = arith.constant 0 : index
    %c0_50 = arith.constant 0 : index
    %183 = vector.load %arg14[%c0_48, %c0_49, %c0_50] : memref<2x8x32xf32, #tpu.memory_space<vmem>>, vector<2x8x32xf32>
    tpu.vector_store %arg14[%c0_48, %c0_49, %c0_50], %182 {strides = array<i32>} : memref<2x8x32xf32, #tpu.memory_space<vmem>>, vector<2x8x32xf32>,
    return
  }
  func.func @transform_0(%arg0: i32) -> (i32, i32, i32) {
    %c0_i32 = arith.constant 0 : i32
    %c0_i32_0 = arith.constant 0 : i32
    %c0_i32_1 = arith.constant 0 : i32
    %c0_i32_2 = arith.constant 0 : i32
    return %c0_i32, %c0_i32_0, %c0_i32_1 : i32, i32, i32
  }
  func.func @transform_1(%arg0: i32) -> (i32, i32) {
    %c0_i32 = arith.constant 0 : i32
    %c0_i32_0 = arith.constant 0 : i32
    %c0_i32_1 = arith.constant 0 : i32
    return %c0_i32, %c0_i32_0 : i32, i32
  }
  func.func @transform_2(%arg0: i32) -> (i32, i32) {
    %c0_i32 = arith.constant 0 : i32
    %c0_i32_0 = arith.constant 0 : i32
    %c0_i32_1 = arith.constant 0 : i32
    return %c0_i32, %c0_i32_0 : i32, i32
  }
  func.func @transform_3(%arg0: i32) -> (i32, i32) {
    %c0_i32 = arith.constant 0 : i32
    %c0_i32_0 = arith.constant 0 : i32
    %c0_i32_1 = arith.constant 0 : i32
    return %c0_i32, %c0_i32_0 : i32, i32
  }
  func.func @transform_4(%arg0: i32) -> (i32, i32) {
    %c0_i32 = arith.constant 0 : i32
    %c0_i32_0 = arith.constant 0 : i32
    %c0_i32_1 = arith.constant 0 : i32
    return %c0_i32, %c0_i32_0 : i32, i32
  }
  func.func @transform_5(%arg0: i32) -> (i32, i32) {
    %c0_i32 = arith.constant 0 : i32
    %c0_i32_0 = arith.constant 0 : i32
    %c0_i32_1 = arith.constant 0 : i32
    return %c0_i32, %c0_i32_0 : i32, i32
  }
  func.func @transform_6(%arg0: i32) -> (i32, i32) {
    %c0_i32 = arith.constant 0 : i32
    %c0_i32_0 = arith.constant 0 : i32
    %c0_i32_1 = arith.constant 0 : i32
    return %c0_i32, %c0_i32_0 : i32, i32
  }
  func.func @transform_7(%arg0: i32) -> (i32, i32) {
    %c0_i32 = arith.constant 0 : i32
    %c0_i32_0 = arith.constant 0 : i32
    %c0_i32_1 = arith.constant 0 : i32
    return %c0_i32, %c0_i32_0 : i32, i32
  }
  func.func @transform_8(%arg0: i32) -> (i32, i32) {
    %c0_i32 = arith.constant 0 : i32
    %c0_i32_0 = arith.constant 0 : i32
    %c0_i32_1 = arith.constant 0 : i32
    return %c0_i32, %c0_i32_0 : i32, i32
  }
  func.func @transform_9(%arg0: i32) -> (i32, i32) {
    %c0_i32 = arith.constant 0 : i32
    %c0_i32_0 = arith.constant 0 : i32
    %c0_i32_1 = arith.constant 0 : i32
    return %c0_i32, %c0_i32_0 : i32, i32
  }
  func.func @transform_10(%arg0: i32) -> (i32, i32) {
    %c0_i32 = arith.constant 0 : i32
    %c0_i32_0 = arith.constant 0 : i32
    %c0_i32_1 = arith.constant 0 : i32
    return %c0_i32, %c0_i32_0 : i32, i32
  }
  func.func @transform_11(%arg0: i32) -> (i32, i32) {
    %c0_i32 = arith.constant 0 : i32
    %c0_i32_0 = arith.constant 0 : i32
    %c0_i32_1 = arith.constant 0 : i32
    return %c0_i32, %c0_i32_0 : i32, i32
  }
  func.func @transform_12(%arg0: i32) -> (i32, i32) {
    %c0_i32 = arith.constant 0 : i32
    %c0_i32_0 = arith.constant 0 : i32
    %c0_i32_1 = arith.constant 0 : i32
    return %c0_i32, %c0_i32_0 : i32, i32
  }
  func.func @transform_13(%arg0: i32) -> (i32, i32, i32) {
    %c0_i32 = arith.constant 0 : i32
    %c0_i32_0 = arith.constant 0 : i32
    %c0_i32_1 = arith.constant 0 : i32
    %c0_i32_2 = arith.constant 0 : i32
    return %c0_i32, %c0_i32_0, %c0_i32_1 : i32, i32, i32
  }
}

</mosaic_0001>

<llo_original>
// kernel: tpu_custom_call.1
$region0: #{tpu_custom_call.1}
  #allocation0 [shape = 'u32[]', space=smem, size = 0x4, offset = 0x4, fixed_abs, tag = 'smem constant byte address 0x4 - core index']
  #allocation1 [shape = 'u32[144,128]{1,0:T(1,128)}', space=vmem, size = 0x12000, scoped, tag = 'internal scratch']
  %s0 = inlined_call_operand.vmem [shape: f32[2,8,32], index: 0, kind: input, shape index: {}]
  %s1 = inlined_call_operand.vmem [shape: f32[1,32], index: 1, kind: input, shape index: {}]
  %s2 = inlined_call_operand.vmem [shape: f32[1,32], index: 2, kind: input, shape index: {}]
  %s3 = inlined_call_operand.vmem [shape: bf16[32,96], index: 3, kind: input, shape index: {}]
  %s4 = inlined_call_operand.vmem [shape: f32[1,96], index: 4, kind: input, shape index: {}]
  %s5 = inlined_call_operand.vmem [shape: bf16[32,32], index: 5, kind: input, shape index: {}]
  %s6 = inlined_call_operand.vmem [shape: f32[1,32], index: 6, kind: input, shape index: {}]
  %s7 = inlined_call_operand.vmem [shape: f32[1,32], index: 7, kind: input, shape index: {}]
  %s8 = inlined_call_operand.vmem [shape: f32[1,32], index: 8, kind: input, shape index: {}]
  %s9 = inlined_call_operand.vmem [shape: bf16[32,128], index: 9, kind: input, shape index: {}]
  %s10 = inlined_call_operand.vmem [shape: f32[1,128], index: 10, kind: input, shape index: {}]
  %s11 = inlined_call_operand.vmem [shape: bf16[128,32], index: 11, kind: input, shape index: {}]
  %s12 = inlined_call_operand.vmem [shape: f32[1,32], index: 12, kind: input, shape index: {}]
  %s13 = inlined_call_operand.hbm [shape: f32[2,8,32], index: 13, kind: output, shape index: {}]
  %s14 = sld [smem:[#allocation0]]
  $region62: #{tpu_custom_call.1} parent=0
    _
  %s16 = ssub.s32 1, %s14
  %s17 = scalar_select 0, %s16, %s14
  $region1: #{tpu_custom_call.1} parent=0
    #allocation2 [shape = 'u8[8192]{0}', space=vmem, size = 0x2000, scoped, tag = 'output window, operand 0, single buffered']
    #allocation3 [shape = 's32[1]{0}', space=sflag, size = 0x4, scoped, tag = 'scoped memory for tpu_custom_call.1']
    %18 = vsyncpa [#allocation3], 0
    // Predicated region
    $region2: #{tpu_custom_call.1} parent=1 // pred_check
      _
    $region3: #{tpu_custom_call.1} parent=1 // pred_check_branch
      %20 = sbr.rel (0) target = $region5
    $region4: #{tpu_custom_call.1} parent=1 // pred_region
      _
    $region5: #{tpu_custom_call.1} parent=1 // pred_fallthru
      _
    // Predicated region
    $region6: #{tpu_custom_call.1} parent=1 // pred_check
      _
    $region7: #{tpu_custom_call.1} parent=1 // pred_check_branch
      %22 = sbr.rel (0) target = $region9
    $region8: #{tpu_custom_call.1} parent=1 // pred_region
      _
    $region9: #{tpu_custom_call.1} parent=1 // pred_fallthru
      _
    // Predicated region
    $region10: #{tpu_custom_call.1} parent=1 // pred_check
      _
    $region11: #{tpu_custom_call.1} parent=1 // pred_check_branch
      %24 = sbr.rel (0) target = $region13
    $region12: #{tpu_custom_call.1} parent=1 // pred_region
      _
    $region13: #{tpu_custom_call.1} parent=1 // pred_fallthru
      _
    // Predicated region
    $region14: #{tpu_custom_call.1} parent=1 // pred_check
      _
    $region15: #{tpu_custom_call.1} parent=1 // pred_check_branch
      %26 = sbr.rel (0) target = $region17
    $region16: #{tpu_custom_call.1} parent=1 // pred_region
      _
    $region17: #{tpu_custom_call.1} parent=1 // pred_fallthru
      _
    // Predicated region
    $region18: #{tpu_custom_call.1} parent=1 // pred_check
      _
    $region19: #{tpu_custom_call.1} parent=1 // pred_check_branch
      %28 = sbr.rel (0) target = $region21
    $region20: #{tpu_custom_call.1} parent=1 // pred_region
      _
    $region21: #{tpu_custom_call.1} parent=1 // pred_fallthru
      _
    // Predicated region
    $region22: #{tpu_custom_call.1} parent=1 // pred_check
      _
    $region23: #{tpu_custom_call.1} parent=1 // pred_check_branch
      %30 = sbr.rel (0) target = $region25
    $region24: #{tpu_custom_call.1} parent=1 // pred_region
      _
    $region25: #{tpu_custom_call.1} parent=1 // pred_fallthru
      _
    // Predicated region
    $region26: #{tpu_custom_call.1} parent=1 // pred_check
      _
    $region27: #{tpu_custom_call.1} parent=1 // pred_check_branch
      %32 = sbr.rel (0) target = $region29
    $region28: #{tpu_custom_call.1} parent=1 // pred_region
      _
    $region29: #{tpu_custom_call.1} parent=1 // pred_fallthru
      _
    // Predicated region
    $region30: #{tpu_custom_call.1} parent=1 // pred_check
      _
    $region31: #{tpu_custom_call.1} parent=1 // pred_check_branch
      %34 = sbr.rel (0) target = $region33
    $region32: #{tpu_custom_call.1} parent=1 // pred_region
      _
    $region33: #{tpu_custom_call.1} parent=1 // pred_fallthru
      _
    // Predicated region
    $region34: #{tpu_custom_call.1} parent=1 // pred_check
      _
    $region35: #{tpu_custom_call.1} parent=1 // pred_check_branch
      %36 = sbr.rel (0) target = $region37
    $region36: #{tpu_custom_call.1} parent=1 // pred_region
      _
    $region37: #{tpu_custom_call.1} parent=1 // pred_fallthru
      _
    // Predicated region
    $region38: #{tpu_custom_call.1} parent=1 // pred_check
      _
    $region39: #{tpu_custom_call.1} parent=1 // pred_check_branch
      %38 = sbr.rel (0) target = $region41
    $region40: #{tpu_custom_call.1} parent=1 // pred_region
      _
    $region41: #{tpu_custom_call.1} parent=1 // pred_fallthru
      _
    // Predicated region
    $region42: #{tpu_custom_call.1} parent=1 // pred_check
      _
    $region43: #{tpu_custom_call.1} parent=1 // pred_check_branch
      %40 = sbr.rel (0) target = $region45
    $region44: #{tpu_custom_call.1} parent=1 // pred_region
      _
    $region45: #{tpu_custom_call.1} parent=1 // pred_fallthru
      _
    // Predicated region
    $region46: #{tpu_custom_call.1} parent=1 // pred_check
      _
    $region47: #{tpu_custom_call.1} parent=1 // pred_check_branch
      %42 = sbr.rel (0) target = $region49
    $region48: #{tpu_custom_call.1} parent=1 // pred_region
      _
    $region49: #{tpu_custom_call.1} parent=1 // pred_fallthru
      _
    // Predicated region
    $region50: #{tpu_custom_call.1} parent=1 // pred_check
      _
    $region51: #{tpu_custom_call.1} parent=1 // pred_check_branch
      %44 = sbr.rel (0) target = $region53
    $region52: #{tpu_custom_call.1} parent=1 // pred_region
      _
    $region53: #{tpu_custom_call.1} parent=1 // pred_fallthru
      _
    %v46 = vld [vmem:[%s0] sm:$0xff]
    %v47 = vld [vmem:[%s0 + $0x8] sm:$0xff]
    %vm48 = vcmask 261120
    %v49 = vsel %vm48, %v46, 0.0
    %50 = vadd.xlane.f32.xlu0 %v49
    %v51 = vpop.xlane.xlu0 %50
    %v52 = vsel %vm48, %v47, 0.0
    %53 = vadd.xlane.f32.xlu0 %v52
    %v54 = vpop.xlane.xlu0 %53
    %v55 = vrcp.pop 32.0
    %v56 = vmul.f32 %v51, %v55
    %v57 = vmul.f32 %v54, %v55
    %v58 = vsub.f32 %v46, %v56
    %v59 = vsub.f32 %v47, %v57
    %v60 = vmul.f32 %v58, %v58
    %v61 = vmul.f32 %v59, %v59
    %v62 = vsel %vm48, %v60, 0.0
    %63 = vadd.xlane.f32.xlu0 %v62
    %v64 = vpop.xlane.xlu0 %63
    %v65 = vsel %vm48, %v61, 0.0
    %66 = vadd.xlane.f32.xlu0 %v65
    %v67 = vpop.xlane.xlu0 %66
    %v68 = vmul.f32 %v64, %v55
    %v69 = vmul.f32 %v67, %v55
    %v70 = vadd.f32 %v68, 1e-05
    %v71 = vadd.f32 %v69, 1e-05
    %v72 = vrsqrt.pop %v70
    %v73 = vrsqrt.pop %v71
    %v74 = vmul.f32 %v58, %v72
    %v75 = vmul.f32 %v59, %v73
    %v76 = vld [vmem:[%s1] sm:$0x1]
    %v78 = vlaneseq
    %v79 = vshrl.u32 %v78, 7
    %v80 = vsub.s32 0, %v79
    %v81 = vrot.slane %v76, %v80
    %v83 = vmul.f32 %v74, %v81
    %v84 = vmul.f32 %v75, %v81
    %v85 = vld [vmem:[%s2] sm:$0x1]
    %v87 = vlaneseq
    %v88 = vshrl.u32 %v87, 7
    %v89 = vsub.s32 0, %v88
    %v90 = vrot.slane %v85, %v89
    %v92 = vadd.f32 %v83, %v90
    %v93 = vadd.f32 %v84, %v90
    %v94 = vpack.c.bf16 %v93, %v92
    %v95 = vld [vmem:[%s3] sm:$0xf]
    %v96 = vld [vmem:[%s3 + $0x4] sm:$0xf]
    %v97 = vld [vmem:[%s3 + $0x8] sm:$0xf]
    %v98 = vld [vmem:[%s3 + $0xc] sm:$0xf]
    %v99 = vld [vmem:[%s4] sm:$0x1]
    %v101 = vlaneseq
    %v102 = vshrl.u32 %v101, 7
    %v103 = vsub.s32 0, %v102
    %v104 = vrot.slane %v99, %v103
    %v110 = vunpack.c.l.b16 %v95
    %v111 = vunpack.c.l.b16 %v96
    %v112 = vunpack.c.l.b16 %v97
    %v113 = vunpack.c.l.b16 %v98
    %v114 = vpack.c.b16 %v111, %v110
    %v115 = vpack.c.b16 %v113, %v112
    %v119 = vsel %vm48, %v94, 0
    %121 = vmatprep.subr.bf16.mxu0 0
    %122 = vmatpush1.bf16.msra.mxu0 0
    %123 = vmatprep.subr.bf16.mxu0 0
    %124 = vmatpush1.bf16.msra.mxu0 0
    %125 = vmatprep.subr.bf16.mxu0 0
    %126 = vmatpush1.bf16.msra.mxu0 0
    %127 = vmatprep.subr.bf16.mxu0 0
    %128 = vmatpush1.bf16.msra.mxu0 0
    %129 = vmatprep.subr.bf16.mxu0 0
    %130 = vmatpush1.bf16.msra.mxu0 0
    %131 = vmatprep.subr.bf16.mxu0 0
    %132 = vmatpush1.bf16.msra.mxu0 0
    %133 = vmatprep.subr.bf16.mxu0 0
    %134 = vmatpush1.bf16.msra.mxu0 %v115
    %135 = vmatprep.subr.bf16.mxu0 0
    %136 = vmatpush1.bf16.msra.mxu0 %v114
    %137 = vmatprep.subr.bf16.mxu0 0
    %138 = vmatpush2.bf16.msra.mxu0 0
    %139 = vmatprep.subr.bf16.mxu0 0
    %140 = vmatpush2.bf16.msra.mxu0 0
    %141 = vmatprep.subr.bf16.mxu0 0
    %142 = vmatpush2.bf16.msra.mxu0 0
    %143 = vmatprep.subr.bf16.mxu0 0
    %144 = vmatpush2.bf16.msra.mxu0 0
    %145 = vmatprep.subr.bf16.mxu0 0
    %146 = vmatpush2.bf16.msra.mxu0 0
    %147 = vmatprep.subr.bf16.mxu0 0
    %148 = vmatpush2.bf16.msra.mxu0 0
    %149 = vmatprep.subr.bf16.mxu0 0
    %150 = vmatpush2.bf16.msra.mxu0 0
    %151 = vmatprep.subr.bf16.mxu0 0
    %152 = vmatpush2.bf16.msra.mxu0 0
    %153 = vmatprep.mubr.bf16.mxu0 0
    %154 = vmatmul.mubr.bf16.gmra.mxu0 %v119
    %v155 = vpop.f32.mrf.mxu0
    %v156 = vadd.f32 %v104, %v155
    %v157 = vpop.f32.mrf.mxu0
    %v158 = vpop.f32.mrf.mxu0
    %v159 = vadd.f32 %v104, %v158
    %v160 = vpop.f32.mrf.mxu0
    %161 = vdwg.mxu0
    %163 = vrot.lane.b32.xlu0 %v156, 120
    %v164 = vpop.permute.xlu0 %163
    %166 = vrot.lane.b32.xlu0 %v156, 112
    %v167 = vpop.permute.xlu0 %166
    %169 = vrot.lane.b32.xlu0 %v156, 104
    %v170 = vpop.permute.xlu0 %169
    %173 = vrot.lane.b32.xlu0 %v159, 120
    %v174 = vpop.permute.xlu0 %173
    %176 = vrot.lane.b32.xlu0 %v159, 112
    %v177 = vpop.permute.xlu0 %176
    %179 = vrot.lane.b32.xlu0 %v159, 104
    %v180 = vpop.permute.xlu0 %179
    %v182 = vpack.c.bf16 %v156, %v156
    %v183 = vpack.c.bf16 %v164, %v164
    %v184 = vpack.c.bf16 %v167, %v167
    %v185 = vpack.c.bf16 %v170, %v170
    %v186 = vpack.c.bf16 %v159, %v159
    %v187 = vpack.c.bf16 %v174, %v174
    %v188 = vpack.c.bf16 %v177, %v177
    %v189 = vpack.c.bf16 %v180, %v180
    %191 = vrot.lane.b32.xlu0 %v182, 96
    %v192 = vpop.permute.xlu0 %191
    %vm193 = vcmask 64512
    %v195 = vsel %vm193, %v182, 0
    %v198 = vsel %vm193, %v192, 0
    %200 = vmatprep.subr.bf16.mxu0 0
    %201 = vmatpush1.bf16.xpose.msra.mxu0 0
    %202 = vmatprep.subr.bf16.mxu0 0
    %203 = vmatpush1.bf16.xpose.msra.mxu0 0
    %204 = vmatprep.subr.bf16.mxu0 0
    %205 = vmatpush1.bf16.xpose.msra.mxu0 0
    %206 = vmatprep.subr.bf16.mxu0 0
    %207 = vmatpush1.bf16.xpose.msra.mxu0 0
    %208 = vmatprep.subr.bf16.mxu0 0
    %209 = vmatpush1.bf16.xpose.msra.mxu0 0
    %210 = vmatprep.subr.bf16.mxu0 0
    %211 = vmatpush1.bf16.xpose.msra.mxu0 0
    %212 = vmatprep.subr.bf16.mxu0 0
    %213 = vmatpush1.bf16.xpose.msra.mxu0 0
    %214 = vmatprep.subr.bf16.mxu0 0
    %215 = vmatpush1.bf16.xpose.msra.mxu0 %v198
    %216 = vmatprep.subr.bf16.mxu0 0
    %217 = vmatpush2.bf16.xpose.msra.mxu0 0
    %218 = vmatprep.subr.bf16.mxu0 0
    %219 = vmatpush2.bf16.xpose.msra.mxu0 0
    %220 = vmatprep.subr.bf16.mxu0 0
    %221 = vmatpush2.bf16.xpose.msra.mxu0 0
    %222 = vmatprep.subr.bf16.mxu0 0
    %223 = vmatpush2.bf16.xpose.msra.mxu0 0
    %224 = vmatprep.subr.bf16.mxu0 0
    %225 = vmatpush2.bf16.xpose.msra.mxu0 0
    %226 = vmatprep.subr.bf16.mxu0 0
    %227 = vmatpush2.bf16.xpose.msra.mxu0 0
    %228 = vmatprep.subr.bf16.mxu0 0
    %229 = vmatpush2.bf16.xpose.msra.mxu0 0
    %230 = vmatprep.subr.bf16.mxu0 0
    %231 = vmatpush2.bf16.xpose.msra.mxu0 0
    %232 = vmatprep.mubr.bf16.mxu0 0
    %233 = vmatmul.mubr.bf16.gmra.mxu0 %v195
    %v234 = vpop.f32.mrf.mxu0
    %v235 = vadd.f32 0.0, %v234
    %v236 = vpop.f32.mrf.mxu0
    %v237 = vpop.f32.mrf.mxu0
    %v238 = vpop.f32.mrf.mxu0
    %239 = vdwg.mxu0
    %241 = vrot.lane.b32.xlu0 %v183, 96
    %v242 = vpop.permute.xlu0 %241
    %v244 = vsel %vm193, %v183, 0
    %v247 = vsel %vm193, %v242, 0
    %249 = vmatprep.subr.bf16.mxu0 0
    %250 = vmatpush1.bf16.xpose.msra.mxu0 0
    %251 = vmatprep.subr.bf16.mxu0 0
    %252 = vmatpush1.bf16.xpose.msra.mxu0 0
    %253 = vmatprep.subr.bf16.mxu0 0
    %254 = vmatpush1.bf16.xpose.msra.mxu0 0
    %255 = vmatprep.subr.bf16.mxu0 0
    %256 = vmatpush1.bf16.xpose.msra.mxu0 0
    %257 = vmatprep.subr.bf16.mxu0 0
    %258 = vmatpush1.bf16.xpose.msra.mxu0 0
    %259 = vmatprep.subr.bf16.mxu0 0
    %260 = vmatpush1.bf16.xpose.msra.mxu0 0
    %261 = vmatprep.subr.bf16.mxu0 0
    %262 = vmatpush1.bf16.xpose.msra.mxu0 0
    %263 = vmatprep.subr.bf16.mxu0 0
    %264 = vmatpush1.bf16.xpose.msra.mxu0 %v247
    %265 = vmatprep.subr.bf16.mxu0 0
    %266 = vmatpush2.bf16.xpose.msra.mxu0 0
    %267 = vmatprep.subr.bf16.mxu0 0
    %268 = vmatpush2.bf16.xpose.msra.mxu0 0
    %269 = vmatprep.subr.bf16.mxu0 0
    %270 = vmatpush2.bf16.xpose.msra.mxu0 0
    %271 = vmatprep.subr.bf16.mxu0 0
    %272 = vmatpush2.bf16.xpose.msra.mxu0 0
    %273 = vmatprep.subr.bf16.mxu0 0
    %274 = vmatpush2.bf16.xpose.msra.mxu0 0
    %275 = vmatprep.subr.bf16.mxu0 0
    %276 = vmatpush2.bf16.xpose.msra.mxu0 0
    %277 = vmatprep.subr.bf16.mxu0 0
    %278 = vmatpush2.bf16.xpose.msra.mxu0 0
    %279 = vmatprep.subr.bf16.mxu0 0
    %280 = vmatpush2.bf16.xpose.msra.mxu0 0
    %281 = vmatprep.mubr.bf16.mxu0 0
    %282 = vmatmul.mubr.bf16.gmra.mxu0 %v244
    %v283 = vpop.f32.mrf.mxu0
    %v284 = vadd.f32 0.0, %v283
    %v285 = vpop.f32.mrf.mxu0
    %v286 = vpop.f32.mrf.mxu0
    %v287 = vpop.f32.mrf.mxu0
    %288 = vdwg.mxu0
    %290 = vrot.lane.b32.xlu0 %v184, 96
    %v291 = vpop.permute.xlu0 %290
    %v293 = vsel %vm193, %v184, 0
    %v296 = vsel %vm193, %v291, 0
    %298 = vmatprep.subr.bf16.mxu0 0
    %299 = vmatpush1.bf16.xpose.msra.mxu0 0
    %300 = vmatprep.subr.bf16.mxu0 0
    %301 = vmatpush1.bf16.xpose.msra.mxu0 0
    %302 = vmatprep.subr.bf16.mxu0 0
    %303 = vmatpush1.bf16.xpose.msra.mxu0 0
    %304 = vmatprep.subr.bf16.mxu0 0
    %305 = vmatpush1.bf16.xpose.msra.mxu0 0
    %306 = vmatprep.subr.bf16.mxu0 0
    %307 = vmatpush1.bf16.xpose.msra.mxu0 0
    %308 = vmatprep.subr.bf16.mxu0 0
    %309 = vmatpush1.bf16.xpose.msra.mxu0 0
    %310 = vmatprep.subr.bf16.mxu0 0
    %311 = vmatpush1.bf16.xpose.msra.mxu0 0
    %312 = vmatprep.subr.bf16.mxu0 0
    %313 = vmatpush1.bf16.xpose.msra.mxu0 %v296
    %314 = vmatprep.subr.bf16.mxu0 0
    %315 = vmatpush2.bf16.xpose.msra.mxu0 0
    %316 = vmatprep.subr.bf16.mxu0 0
    %317 = vmatpush2.bf16.xpose.msra.mxu0 0
    %318 = vmatprep.subr.bf16.mxu0 0
    %319 = vmatpush2.bf16.xpose.msra.mxu0 0
    %320 = vmatprep.subr.bf16.mxu0 0
    %321 = vmatpush2.bf16.xpose.msra.mxu0 0
    %322 = vmatprep.subr.bf16.mxu0 0
    %323 = vmatpush2.bf16.xpose.msra.mxu0 0
    %324 = vmatprep.subr.bf16.mxu0 0
    %325 = vmatpush2.bf16.xpose.msra.mxu0 0
    %326 = vmatprep.subr.bf16.mxu0 0
    %327 = vmatpush2.bf16.xpose.msra.mxu0 0
    %328 = vmatprep.subr.bf16.mxu0 0
    %329 = vmatpush2.bf16.xpose.msra.mxu0 0
    %330 = vmatprep.mubr.bf16.mxu0 0
    %331 = vmatmul.mubr.bf16.gmra.mxu0 %v293
    %v332 = vpop.f32.mrf.mxu0
    %v333 = vadd.f32 0.0, %v332
    %v334 = vpop.f32.mrf.mxu0
    %v335 = vpop.f32.mrf.mxu0
    %v336 = vpop.f32.mrf.mxu0
    %337 = vdwg.mxu0
    %339 = vrot.lane.b32.xlu0 %v185, 96
    %v340 = vpop.permute.xlu0 %339
    %v342 = vsel %vm193, %v185, 0
    %v345 = vsel %vm193, %v340, 0
    %347 = vmatprep.subr.bf16.mxu0 0
    %348 = vmatpush1.bf16.xpose.msra.mxu0 0
    %349 = vmatprep.subr.bf16.mxu0 0
    %350 = vmatpush1.bf16.xpose.msra.mxu0 0
    %351 = vmatprep.subr.bf16.mxu0 0
    %352 = vmatpush1.bf16.xpose.msra.mxu0 0
    %353 = vmatprep.subr.bf16.mxu0 0
    %354 = vmatpush1.bf16.xpose.msra.mxu0 0
    %355 = vmatprep.subr.bf16.mxu0 0
    %356 = vmatpush1.bf16.xpose.msra.mxu0 0
    %357 = vmatprep.subr.bf16.mxu0 0
    %358 = vmatpush1.bf16.xpose.msra.mxu0 0
    %359 = vmatprep.subr.bf16.mxu0 0
    %360 = vmatpush1.bf16.xpose.msra.mxu0 0
    %361 = vmatprep.subr.bf16.mxu0 0
    %362 = vmatpush1.bf16.xpose.msra.mxu0 %v345
    %363 = vmatprep.subr.bf16.mxu0 0
    %364 = vmatpush2.bf16.xpose.msra.mxu0 0
    %365 = vmatprep.subr.bf16.mxu0 0
    %366 = vmatpush2.bf16.xpose.msra.mxu0 0
    %367 = vmatprep.subr.bf16.mxu0 0
    %368 = vmatpush2.bf16.xpose.msra.mxu0 0
    %369 = vmatprep.subr.bf16.mxu0 0
    %370 = vmatpush2.bf16.xpose.msra.mxu0 0
    %371 = vmatprep.subr.bf16.mxu0 0
    %372 = vmatpush2.bf16.xpose.msra.mxu0 0
    %373 = vmatprep.subr.bf16.mxu0 0
    %374 = vmatpush2.bf16.xpose.msra.mxu0 0
    %375 = vmatprep.subr.bf16.mxu0 0
    %376 = vmatpush2.bf16.xpose.msra.mxu0 0
    %377 = vmatprep.subr.bf16.mxu0 0
    %378 = vmatpush2.bf16.xpose.msra.mxu0 0
    %379 = vmatprep.mubr.bf16.mxu0 0
    %380 = vmatmul.mubr.bf16.gmra.mxu0 %v342
    %v381 = vpop.f32.mrf.mxu0
    %v382 = vadd.f32 0.0, %v381
    %v383 = vpop.f32.mrf.mxu0
    %v384 = vpop.f32.mrf.mxu0
    %v385 = vpop.f32.mrf.mxu0
    %386 = vdwg.mxu0
    %388 = vrot.lane.b32.xlu0 %v186, 96
    %v389 = vpop.permute.xlu0 %388
    %v391 = vsel %vm193, %v186, 0
    %v394 = vsel %vm193, %v389, 0
    %396 = vmatprep.subr.bf16.mxu0 0
    %397 = vmatpush1.bf16.xpose.msra.mxu0 0
    %398 = vmatprep.subr.bf16.mxu0 0
    %399 = vmatpush1.bf16.xpose.msra.mxu0 0
    %400 = vmatprep.subr.bf16.mxu0 0
    %401 = vmatpush1.bf16.xpose.msra.mxu0 0
    %402 = vmatprep.subr.bf16.mxu0 0
    %403 = vmatpush1.bf16.xpose.msra.mxu0 0
    %404 = vmatprep.subr.bf16.mxu0 0
    %405 = vmatpush1.bf16.xpose.msra.mxu0 0
    %406 = vmatprep.subr.bf16.mxu0 0
    %407 = vmatpush1.bf16.xpose.msra.mxu0 0
    %408 = vmatprep.subr.bf16.mxu0 0
    %409 = vmatpush1.bf16.xpose.msra.mxu0 0
    %410 = vmatprep.subr.bf16.mxu0 0
    %411 = vmatpush1.bf16.xpose.msra.mxu0 %v394
    %412 = vmatprep.subr.bf16.mxu0 0
    %413 = vmatpush2.bf16.xpose.msra.mxu0 0
    %414 = vmatprep.subr.bf16.mxu0 0
    %415 = vmatpush2.bf16.xpose.msra.mxu0 0
    %416 = vmatprep.subr.bf16.mxu0 0
    %417 = vmatpush2.bf16.xpose.msra.mxu0 0
    %418 = vmatprep.subr.bf16.mxu0 0
    %419 = vmatpush2.bf16.xpose.msra.mxu0 0
    %420 = vmatprep.subr.bf16.mxu0 0
    %421 = vmatpush2.bf16.xpose.msra.mxu0 0
    %422 = vmatprep.subr.bf16.mxu0 0
    %423 = vmatpush2.bf16.xpose.msra.mxu0 0
    %424 = vmatprep.subr.bf16.mxu0 0
    %425 = vmatpush2.bf16.xpose.msra.mxu0 0
    %426 = vmatprep.subr.bf16.mxu0 0
    %427 = vmatpush2.bf16.xpose.msra.mxu0 0
    %428 = vmatprep.mubr.bf16.mxu0 0
    %429 = vmatmul.mubr.bf16.gmra.mxu0 %v391
    %v430 = vpop.f32.mrf.mxu0
    %v431 = vadd.f32 0.0, %v430
    %v432 = vpop.f32.mrf.mxu0
    %v433 = vpop.f32.mrf.mxu0
    %v434 = vpop.f32.mrf.mxu0
    %435 = vdwg.mxu0
    %437 = vrot.lane.b32.xlu0 %v187, 96
    %v438 = vpop.permute.xlu0 %437
    %v440 = vsel %vm193, %v187, 0
    %v443 = vsel %vm193, %v438, 0
    %445 = vmatprep.subr.bf16.mxu0 0
    %446 = vmatpush1.bf16.xpose.msra.mxu0 0
    %447 = vmatprep.subr.bf16.mxu0 0
    %448 = vmatpush1.bf16.xpose.msra.mxu0 0
    %449 = vmatprep.subr.bf16.mxu0 0
    %450 = vmatpush1.bf16.xpose.msra.mxu0 0
    %451 = vmatprep.subr.bf16.mxu0 0
    %452 = vmatpush1.bf16.xpose.msra.mxu0 0
    %453 = vmatprep.subr.bf16.mxu0 0
    %454 = vmatpush1.bf16.xpose.msra.mxu0 0
    %455 = vmatprep.subr.bf16.mxu0 0
    %456 = vmatpush1.bf16.xpose.msra.mxu0 0
    %457 = vmatprep.subr.bf16.mxu0 0
    %458 = vmatpush1.bf16.xpose.msra.mxu0 0
    %459 = vmatprep.subr.bf16.mxu0 0
    %460 = vmatpush1.bf16.xpose.msra.mxu0 %v443
    %461 = vmatprep.subr.bf16.mxu0 0
    %462 = vmatpush2.bf16.xpose.msra.mxu0 0
    %463 = vmatprep.subr.bf16.mxu0 0
    %464 = vmatpush2.bf16.xpose.msra.mxu0 0
    %465 = vmatprep.subr.bf16.mxu0 0
    %466 = vmatpush2.bf16.xpose.msra.mxu0 0
    %467 = vmatprep.subr.bf16.mxu0 0
    %468 = vmatpush2.bf16.xpose.msra.mxu0 0
    %469 = vmatprep.subr.bf16.mxu0 0
    %470 = vmatpush2.bf16.xpose.msra.mxu0 0
    %471 = vmatprep.subr.bf16.mxu0 0
    %472 = vmatpush2.bf16.xpose.msra.mxu0 0
    %473 = vmatprep.subr.bf16.mxu0 0
    %474 = vmatpush2.bf16.xpose.msra.mxu0 0
    %475 = vmatprep.subr.bf16.mxu0 0
    %476 = vmatpush2.bf16.xpose.msra.mxu0 0
    %477 = vmatprep.mubr.bf16.mxu0 0
    %478 = vmatmul.mubr.bf16.gmra.mxu0 %v440
    %v479 = vpop.f32.mrf.mxu0
    %v480 = vadd.f32 0.0, %v479
    %v481 = vpop.f32.mrf.mxu0
    %v482 = vpop.f32.mrf.mxu0
    %v483 = vpop.f32.mrf.mxu0
    %484 = vdwg.mxu0
    %486 = vrot.lane.b32.xlu0 %v188, 96
    %v487 = vpop.permute.xlu0 %486
    %v489 = vsel %vm193, %v188, 0
    %v492 = vsel %vm193, %v487, 0
    %494 = vmatprep.subr.bf16.mxu0 0
    %495 = vmatpush1.bf16.xpose.msra.mxu0 0
    %496 = vmatprep.subr.bf16.mxu0 0
    %497 = vmatpush1.bf16.xpose.msra.mxu0 0
    %498 = vmatprep.subr.bf16.mxu0 0
    %499 = vmatpush1.bf16.xpose.msra.mxu0 0
    %500 = vmatprep.subr.bf16.mxu0 0
    %501 = vmatpush1.bf16.xpose.msra.mxu0 0
    %502 = vmatprep.subr.bf16.mxu0 0
    %503 = vmatpush1.bf16.xpose.msra.mxu0 0
    %504 = vmatprep.subr.bf16.mxu0 0
    %505 = vmatpush1.bf16.xpose.msra.mxu0 0
    %506 = vmatprep.subr.bf16.mxu0 0
    %507 = vmatpush1.bf16.xpose.msra.mxu0 0
    %508 = vmatprep.subr.bf16.mxu0 0
    %509 = vmatpush1.bf16.xpose.msra.mxu0 %v492
    %510 = vmatprep.subr.bf16.mxu0 0
    %511 = vmatpush2.bf16.xpose.msra.mxu0 0
    %512 = vmatprep.subr.bf16.mxu0 0
    %513 = vmatpush2.bf16.xpose.msra.mxu0 0
    %514 = vmatprep.subr.bf16.mxu0 0
    %515 = vmatpush2.bf16.xpose.msra.mxu0 0
    %516 = vmatprep.subr.bf16.mxu0 0
    %517 = vmatpush2.bf16.xpose.msra.mxu0 0
    %518 = vmatprep.subr.bf16.mxu0 0
    %519 = vmatpush2.bf16.xpose.msra.mxu0 0
    %520 = vmatprep.subr.bf16.mxu0 0
    %521 = vmatpush2.bf16.xpose.msra.mxu0 0
    %522 = vmatprep.subr.bf16.mxu0 0
    %523 = vmatpush2.bf16.xpose.msra.mxu0 0
    %524 = vmatprep.subr.bf16.mxu0 0
    %525 = vmatpush2.bf16.xpose.msra.mxu0 0
    %526 = vmatprep.mubr.bf16.mxu0 0
    %527 = vmatmul.mubr.bf16.gmra.mxu0 %v489
    %v528 = vpop.f32.mrf.mxu0
    %v529 = vadd.f32 0.0, %v528
    %v530 = vpop.f32.mrf.mxu0
    %v531 = vpop.f32.mrf.mxu0
    %v532 = vpop.f32.mrf.mxu0
    %533 = vdwg.mxu0
    %535 = vrot.lane.b32.xlu0 %v189, 96
    %v536 = vpop.permute.xlu0 %535
    %v538 = vsel %vm193, %v189, 0
    %v541 = vsel %vm193, %v536, 0
    %543 = vmatprep.subr.bf16.mxu0 0
    %544 = vmatpush1.bf16.xpose.msra.mxu0 0
    %545 = vmatprep.subr.bf16.mxu0 0
    %546 = vmatpush1.bf16.xpose.msra.mxu0 0
    %547 = vmatprep.subr.bf16.mxu0 0
    %548 = vmatpush1.bf16.xpose.msra.mxu0 0
    %549 = vmatprep.subr.bf16.mxu0 0
    %550 = vmatpush1.bf16.xpose.msra.mxu0 0
    %551 = vmatprep.subr.bf16.mxu0 0
    %552 = vmatpush1.bf16.xpose.msra.mxu0 0
    %553 = vmatprep.subr.bf16.mxu0 0
    %554 = vmatpush1.bf16.xpose.msra.mxu0 0
    %555 = vmatprep.subr.bf16.mxu0 0
    %556 = vmatpush1.bf16.xpose.msra.mxu0 0
    %557 = vmatprep.subr.bf16.mxu0 0
    %558 = vmatpush1.bf16.xpose.msra.mxu0 %v541
    %559 = vmatprep.subr.bf16.mxu0 0
    %560 = vmatpush2.bf16.xpose.msra.mxu0 0
    %561 = vmatprep.subr.bf16.mxu0 0
    %562 = vmatpush2.bf16.xpose.msra.mxu0 0
    %563 = vmatprep.subr.bf16.mxu0 0
    %564 = vmatpush2.bf16.xpose.msra.mxu0 0
    %565 = vmatprep.subr.bf16.mxu0 0
    %566 = vmatpush2.bf16.xpose.msra.mxu0 0
    %567 = vmatprep.subr.bf16.mxu0 0
    %568 = vmatpush2.bf16.xpose.msra.mxu0 0
    %569 = vmatprep.subr.bf16.mxu0 0
    %570 = vmatpush2.bf16.xpose.msra.mxu0 0
    %571 = vmatprep.subr.bf16.mxu0 0
    %572 = vmatpush2.bf16.xpose.msra.mxu0 0
    %573 = vmatprep.subr.bf16.mxu0 0
    %574 = vmatpush2.bf16.xpose.msra.mxu0 0
    %575 = vmatprep.mubr.bf16.mxu0 0
    %576 = vmatmul.mubr.bf16.gmra.mxu0 %v538
    %v577 = vpop.f32.mrf.mxu0
    %v578 = vadd.f32 0.0, %v577
    %v579 = vpop.f32.mrf.mxu0
    %v580 = vpop.f32.mrf.mxu0
    %v581 = vpop.f32.mrf.mxu0
    %582 = vdwg.mxu0
    %v583 = vlaneseq
    %v584 = vshrl.u32 %v583, 7
    %v585 = vlaneseq
    %v586 = vand.u32 %v585, 127
    %vm587 = vcmp.ge.s32.totalorder %v584, %v586
    %v588 = vsel %vm587, 1, 0
    %vm589 = vcmp.eq.s32.totalorder %v588, 1
    %v590 = vsel %vm589, %v235, -inf
    %v591 = vsel %vm589, %v284, -inf
    %v592 = vsel %vm589, %v333, -inf
    %v593 = vsel %vm589, %v382, -inf
    %v594 = vsel %vm589, %v431, -inf
    %v595 = vsel %vm589, %v480, -inf
    %v596 = vsel %vm589, %v529, -inf
    %v597 = vsel %vm589, %v578, -inf
    %v598 = vsel %vm193, %v590, -inf
    %599 = vmax.xlane.f32.xlu0 %v598
    %v600 = vpop.xlane.xlu0 %599
    %v601 = vsel %vm193, %v591, -inf
    %602 = vmax.xlane.f32.xlu0 %v601
    %v603 = vpop.xlane.xlu0 %602
    %v604 = vsel %vm193, %v592, -inf
    %605 = vmax.xlane.f32.xlu0 %v604
    %v606 = vpop.xlane.xlu0 %605
    %v607 = vsel %vm193, %v593, -inf
    %608 = vmax.xlane.f32.xlu0 %v607
    %v609 = vpop.xlane.xlu0 %608
    %v610 = vsel %vm193, %v594, -inf
    %611 = vmax.xlane.f32.xlu0 %v610
    %v612 = vpop.xlane.xlu0 %611
    %v613 = vsel %vm193, %v595, -inf
    %614 = vmax.xlane.f32.xlu0 %v613
    %v615 = vpop.xlane.xlu0 %614
    %v616 = vsel %vm193, %v596, -inf
    %617 = vmax.xlane.f32.xlu0 %v616
    %v618 = vpop.xlane.xlu0 %617
    %v619 = vsel %vm193, %v597, -inf
    %620 = vmax.xlane.f32.xlu0 %v619
    %v621 = vpop.xlane.xlu0 %620
    %v622 = vsub.f32 %v590, %v600
    %v623 = vsub.f32 %v591, %v603
    %v624 = vsub.f32 %v592, %v606
    %v625 = vsub.f32 %v593, %v609
    %v626 = vsub.f32 %v594, %v612
    %v627 = vsub.f32 %v595, %v615
    %v628 = vsub.f32 %v596, %v618
    %v629 = vsub.f32 %v597, %v621
    %v630 = vmul.f32 %v622, 1.442695
    %v631 = vpow.pop %v630
    %v632 = vmul.f32 %v623, 1.442695
    %v633 = vpow.pop %v632
    %v634 = vmul.f32 %v624, 1.442695
    %v635 = vpow.pop %v634
    %v636 = vmul.f32 %v625, 1.442695
    %v637 = vpow.pop %v636
    %v638 = vmul.f32 %v626, 1.442695
    %v639 = vpow.pop %v638
    %v640 = vmul.f32 %v627, 1.442695
    %v641 = vpow.pop %v640
    %v642 = vmul.f32 %v628, 1.442695
    %v643 = vpow.pop %v642
    %v644 = vmul.f32 %v629, 1.442695
    %v645 = vpow.pop %v644
    %v646 = vsel %vm193, %v631, 0.0
    %647 = vadd.xlane.f32.xlu0 %v646
    %v648 = vpop.xlane.xlu0 %647
    %v649 = vsel %vm193, %v633, 0.0
    %650 = vadd.xlane.f32.xlu0 %v649
    %v651 = vpop.xlane.xlu0 %650
    %v652 = vsel %vm193, %v635, 0.0
    %653 = vadd.xlane.f32.xlu0 %v652
    %v654 = vpop.xlane.xlu0 %653
    %v655 = vsel %vm193, %v637, 0.0
    %656 = vadd.xlane.f32.xlu0 %v655
    %v657 = vpop.xlane.xlu0 %656
    %v658 = vsel %vm193, %v639, 0.0
    %659 = vadd.xlane.f32.xlu0 %v658
    %v660 = vpop.xlane.xlu0 %659
    %v661 = vsel %vm193, %v641, 0.0
    %662 = vadd.xlane.f32.xlu0 %v661
    %v663 = vpop.xlane.xlu0 %662
    %v664 = vsel %vm193, %v643, 0.0
    %665 = vadd.xlane.f32.xlu0 %v664
    %v666 = vpop.xlane.xlu0 %665
    %v667 = vsel %vm193, %v645, 0.0
    %668 = vadd.xlane.f32.xlu0 %v667
    %v669 = vpop.xlane.xlu0 %668
    %v670 = vrcp.pop %v648
    %v671 = vrcp.pop %v651
    %v672 = vrcp.pop %v654
    %v673 = vrcp.pop %v657
    %v674 = vrcp.pop %v660
    %v675 = vrcp.pop %v663
    %v676 = vrcp.pop %v666
    %v677 = vrcp.pop %v669
    %v678 = vmul.f32 %v631, %v670
    %v679 = vmul.f32 %v633, %v671
    %v680 = vmul.f32 %v635, %v672
    %v681 = vmul.f32 %v637, %v673
    %v682 = vmul.f32 %v639, %v674
    %v683 = vmul.f32 %v641, %v675
    %v684 = vmul.f32 %v643, %v676
    %v685 = vmul.f32 %v645, %v677
    %v686 = vpack.c.bf16 %v678, %v678
    %v687 = vpack.c.bf16 %v679, %v679
    %v688 = vpack.c.bf16 %v680, %v680
    %v689 = vpack.c.bf16 %v681, %v681
    %v690 = vpack.c.bf16 %v682, %v682
    %v691 = vpack.c.bf16 %v683, %v683
    %v692 = vpack.c.bf16 %v684, %v684
    %v693 = vpack.c.bf16 %v685, %v685
    %694 = vrot.lane.b32.xlu0 %v182, 64
    %v695 = vpop.permute.xlu0 %694
    %v697 = vsel %vm193, %v686, 0
    %vm699 = vcmask 1043456
    %v701 = vsel %vm699, %v695, 0
    %703 = vmatprep.subr.bf16.mxu0 0
    %704 = vmatpush1.bf16.msra.mxu0 0
    %705 = vmatprep.subr.bf16.mxu0 0
    %706 = vmatpush1.bf16.msra.mxu0 0
    %707 = vmatprep.subr.bf16.mxu0 0
    %708 = vmatpush1.bf16.msra.mxu0 0
    %709 = vmatprep.subr.bf16.mxu0 0
    %710 = vmatpush1.bf16.msra.mxu0 0
    %711 = vmatprep.subr.bf16.mxu0 0
    %712 = vmatpush1.bf16.msra.mxu0 0
    %713 = vmatprep.subr.bf16.mxu0 0
    %714 = vmatpush1.bf16.msra.mxu0 0
    %715 = vmatprep.subr.bf16.mxu0 0
    %716 = vmatpush1.bf16.msra.mxu0 0
    %717 = vmatprep.subr.bf16.mxu0 0
    %718 = vmatpush1.bf16.msra.mxu0 %v701
    %719 = vmatprep.subr.bf16.mxu0 0
    %720 = vmatpush2.bf16.msra.mxu0 0
    %721 = vmatprep.subr.bf16.mxu0 0
    %722 = vmatpush2.bf16.msra.mxu0 0
    %723 = vmatprep.subr.bf16.mxu0 0
    %724 = vmatpush2.bf16.msra.mxu0 0
    %725 = vmatprep.subr.bf16.mxu0 0
    %726 = vmatpush2.bf16.msra.mxu0 0
    %727 = vmatprep.subr.bf16.mxu0 0
    %728 = vmatpush2.bf16.msra.mxu0 0
    %729 = vmatprep.subr.bf16.mxu0 0
    %730 = vmatpush2.bf16.msra.mxu0 0
    %731 = vmatprep.subr.bf16.mxu0 0
    %732 = vmatpush2.bf16.msra.mxu0 0
    %733 = vmatprep.subr.bf16.mxu0 0
    %734 = vmatpush2.bf16.msra.mxu0 0
    %735 = vmatprep.mubr.bf16.mxu0 0
    %736 = vmatmul.mubr.bf16.gmra.mxu0 %v697
    %v737 = vpop.f32.mrf.mxu0
    %v738 = vadd.f32 0.0, %v737
    %v739 = vpop.f32.mrf.mxu0
    %v740 = vpop.f32.mrf.mxu0
    %v741 = vpop.f32.mrf.mxu0
    %742 = vdwg.mxu0
    %743 = vrot.lane.b32.xlu0 %v183, 64
    %v744 = vpop.permute.xlu0 %743
    %v746 = vsel %vm193, %v687, 0
    %v749 = vsel %vm699, %v744, 0
    %751 = vmatprep.subr.bf16.mxu0 0
    %752 = vmatpush1.bf16.msra.mxu0 0
    %753 = vmatprep.subr.bf16.mxu0 0
    %754 = vmatpush1.bf16.msra.mxu0 0
    %755 = vmatprep.subr.bf16.mxu0 0
    %756 = vmatpush1.bf16.msra.mxu0 0
    %757 = vmatprep.subr.bf16.mxu0 0
    %758 = vmatpush1.bf16.msra.mxu0 0
    %759 = vmatprep.subr.bf16.mxu0 0
    %760 = vmatpush1.bf16.msra.mxu0 0
    %761 = vmatprep.subr.bf16.mxu0 0
    %762 = vmatpush1.bf16.msra.mxu0 0
    %763 = vmatprep.subr.bf16.mxu0 0
    %764 = vmatpush1.bf16.msra.mxu0 0
    %765 = vmatprep.subr.bf16.mxu0 0
    %766 = vmatpush1.bf16.msra.mxu0 %v749
    %767 = vmatprep.subr.bf16.mxu0 0
    %768 = vmatpush2.bf16.msra.mxu0 0
    %769 = vmatprep.subr.bf16.mxu0 0
    %770 = vmatpush2.bf16.msra.mxu0 0
    %771 = vmatprep.subr.bf16.mxu0 0
    %772 = vmatpush2.bf16.msra.mxu0 0
    %773 = vmatprep.subr.bf16.mxu0 0
    %774 = vmatpush2.bf16.msra.mxu0 0
    %775 = vmatprep.subr.bf16.mxu0 0
    %776 = vmatpush2.bf16.msra.mxu0 0
    %777 = vmatprep.subr.bf16.mxu0 0
    %778 = vmatpush2.bf16.msra.mxu0 0
    %779 = vmatprep.subr.bf16.mxu0 0
    %780 = vmatpush2.bf16.msra.mxu0 0
    %781 = vmatprep.subr.bf16.mxu0 0
    %782 = vmatpush2.bf16.msra.mxu0 0
    %783 = vmatprep.mubr.bf16.mxu0 0
    %784 = vmatmul.mubr.bf16.gmra.mxu0 %v746
    %v785 = vpop.f32.mrf.mxu0
    %v786 = vadd.f32 0.0, %v785
    %v787 = vpop.f32.mrf.mxu0
    %v788 = vpop.f32.mrf.mxu0
    %v789 = vpop.f32.mrf.mxu0
    %790 = vdwg.mxu0
    %791 = vrot.lane.b32.xlu0 %v184, 64
    %v792 = vpop.permute.xlu0 %791
    %v794 = vsel %vm193, %v688, 0
    %v797 = vsel %vm699, %v792, 0
    %799 = vmatprep.subr.bf16.mxu0 0
    %800 = vmatpush1.bf16.msra.mxu0 0
    %801 = vmatprep.subr.bf16.mxu0 0
    %802 = vmatpush1.bf16.msra.mxu0 0
    %803 = vmatprep.subr.bf16.mxu0 0
    %804 = vmatpush1.bf16.msra.mxu0 0
    %805 = vmatprep.subr.bf16.mxu0 0
    %806 = vmatpush1.bf16.msra.mxu0 0
    %807 = vmatprep.subr.bf16.mxu0 0
    %808 = vmatpush1.bf16.msra.mxu0 0
    %809 = vmatprep.subr.bf16.mxu0 0
    %810 = vmatpush1.bf16.msra.mxu0 0
    %811 = vmatprep.subr.bf16.mxu0 0
    %812 = vmatpush1.bf16.msra.mxu0 0
    %813 = vmatprep.subr.bf16.mxu0 0
    %814 = vmatpush1.bf16.msra.mxu0 %v797
    %815 = vmatprep.subr.bf16.mxu0 0
    %816 = vmatpush2.bf16.msra.mxu0 0
    %817 = vmatprep.subr.bf16.mxu0 0
    %818 = vmatpush2.bf16.msra.mxu0 0
    %819 = vmatprep.subr.bf16.mxu0 0
    %820 = vmatpush2.bf16.msra.mxu0 0
    %821 = vmatprep.subr.bf16.mxu0 0
    %822 = vmatpush2.bf16.msra.mxu0 0
    %823 = vmatprep.subr.bf16.mxu0 0
    %824 = vmatpush2.bf16.msra.mxu0 0
    %825 = vmatprep.subr.bf16.mxu0 0
    %826 = vmatpush2.bf16.msra.mxu0 0
    %827 = vmatprep.subr.bf16.mxu0 0
    %828 = vmatpush2.bf16.msra.mxu0 0
    %829 = vmatprep.subr.bf16.mxu0 0
    %830 = vmatpush2.bf16.msra.mxu0 0
    %831 = vmatprep.mubr.bf16.mxu0 0
    %832 = vmatmul.mubr.bf16.gmra.mxu0 %v794
    %v833 = vpop.f32.mrf.mxu0
    %v834 = vadd.f32 0.0, %v833
    %v835 = vpop.f32.mrf.mxu0
    %v836 = vpop.f32.mrf.mxu0
    %v837 = vpop.f32.mrf.mxu0
    %838 = vdwg.mxu0
    %839 = vrot.lane.b32.xlu0 %v185, 64
    %v840 = vpop.permute.xlu0 %839
    %v842 = vsel %vm193, %v689, 0
    %v845 = vsel %vm699, %v840, 0
    %847 = vmatprep.subr.bf16.mxu0 0
    %848 = vmatpush1.bf16.msra.mxu0 0
    %849 = vmatprep.subr.bf16.mxu0 0
    %850 = vmatpush1.bf16.msra.mxu0 0
    %851 = vmatprep.subr.bf16.mxu0 0
    %852 = vmatpush1.bf16.msra.mxu0 0
    %853 = vmatprep.subr.bf16.mxu0 0
    %854 = vmatpush1.bf16.msra.mxu0 0
    %855 = vmatprep.subr.bf16.mxu0 0
    %856 = vmatpush1.bf16.msra.mxu0 0
    %857 = vmatprep.subr.bf16.mxu0 0
    %858 = vmatpush1.bf16.msra.mxu0 0
    %859 = vmatprep.subr.bf16.mxu0 0
    %860 = vmatpush1.bf16.msra.mxu0 0
    %861 = vmatprep.subr.bf16.mxu0 0
    %862 = vmatpush1.bf16.msra.mxu0 %v845
    %863 = vmatprep.subr.bf16.mxu0 0
    %864 = vmatpush2.bf16.msra.mxu0 0
    %865 = vmatprep.subr.bf16.mxu0 0
    %866 = vmatpush2.bf16.msra.mxu0 0
    %867 = vmatprep.subr.bf16.mxu0 0
    %868 = vmatpush2.bf16.msra.mxu0 0
    %869 = vmatprep.subr.bf16.mxu0 0
    %870 = vmatpush2.bf16.msra.mxu0 0
    %871 = vmatprep.subr.bf16.mxu0 0
    %872 = vmatpush2.bf16.msra.mxu0 0
    %873 = vmatprep.subr.bf16.mxu0 0
    %874 = vmatpush2.bf16.msra.mxu0 0
    %875 = vmatprep.subr.bf16.mxu0 0
    %876 = vmatpush2.bf16.msra.mxu0 0
    %877 = vmatprep.subr.bf16.mxu0 0
    %878 = vmatpush2.bf16.msra.mxu0 0
    %879 = vmatprep.mubr.bf16.mxu0 0
    %880 = vmatmul.mubr.bf16.gmra.mxu0 %v842
    %v881 = vpop.f32.mrf.mxu0
    %v882 = vadd.f32 0.0, %v881
    %v883 = vpop.f32.mrf.mxu0
    %v884 = vpop.f32.mrf.mxu0
    %v885 = vpop.f32.mrf.mxu0
    %886 = vdwg.mxu0
    %887 = vrot.lane.b32.xlu0 %v186, 64
    %v888 = vpop.permute.xlu0 %887
    %v890 = vsel %vm193, %v690, 0
    %v893 = vsel %vm699, %v888, 0
    %895 = vmatprep.subr.bf16.mxu0 0
    %896 = vmatpush1.bf16.msra.mxu0 0
    %897 = vmatprep.subr.bf16.mxu0 0
    %898 = vmatpush1.bf16.msra.mxu0 0
    %899 = vmatprep.subr.bf16.mxu0 0
    %900 = vmatpush1.bf16.msra.mxu0 0
    %901 = vmatprep.subr.bf16.mxu0 0
    %902 = vmatpush1.bf16.msra.mxu0 0
    %903 = vmatprep.subr.bf16.mxu0 0
    %904 = vmatpush1.bf16.msra.mxu0 0
    %905 = vmatprep.subr.bf16.mxu0 0
    %906 = vmatpush1.bf16.msra.mxu0 0
    %907 = vmatprep.subr.bf16.mxu0 0
    %908 = vmatpush1.bf16.msra.mxu0 0
    %909 = vmatprep.subr.bf16.mxu0 0
    %910 = vmatpush1.bf16.msra.mxu0 %v893
    %911 = vmatprep.subr.bf16.mxu0 0
    %912 = vmatpush2.bf16.msra.mxu0 0
    %913 = vmatprep.subr.bf16.mxu0 0
    %914 = vmatpush2.bf16.msra.mxu0 0
    %915 = vmatprep.subr.bf16.mxu0 0
    %916 = vmatpush2.bf16.msra.mxu0 0
    %917 = vmatprep.subr.bf16.mxu0 0
    %918 = vmatpush2.bf16.msra.mxu0 0
    %919 = vmatprep.subr.bf16.mxu0 0
    %920 = vmatpush2.bf16.msra.mxu0 0
    %921 = vmatprep.subr.bf16.mxu0 0
    %922 = vmatpush2.bf16.msra.mxu0 0
    %923 = vmatprep.subr.bf16.mxu0 0
    %924 = vmatpush2.bf16.msra.mxu0 0
    %925 = vmatprep.subr.bf16.mxu0 0
    %926 = vmatpush2.bf16.msra.mxu0 0
    %927 = vmatprep.mubr.bf16.mxu0 0
    %928 = vmatmul.mubr.bf16.gmra.mxu0 %v890
    %v929 = vpop.f32.mrf.mxu0
    %v930 = vadd.f32 0.0, %v929
    %v931 = vpop.f32.mrf.mxu0
    %v932 = vpop.f32.mrf.mxu0
    %v933 = vpop.f32.mrf.mxu0
    %934 = vdwg.mxu0
    %935 = vrot.lane.b32.xlu0 %v187, 64
    %v936 = vpop.permute.xlu0 %935
    %v938 = vsel %vm193, %v691, 0
    %v941 = vsel %vm699, %v936, 0
    %943 = vmatprep.subr.bf16.mxu0 0
    %944 = vmatpush1.bf16.msra.mxu0 0
    %945 = vmatprep.subr.bf16.mxu0 0
    %946 = vmatpush1.bf16.msra.mxu0 0
    %947 = vmatprep.subr.bf16.mxu0 0
    %948 = vmatpush1.bf16.msra.mxu0 0
    %949 = vmatprep.subr.bf16.mxu0 0
    %950 = vmatpush1.bf16.msra.mxu0 0
    %951 = vmatprep.subr.bf16.mxu0 0
    %952 = vmatpush1.bf16.msra.mxu0 0
    %953 = vmatprep.subr.bf16.mxu0 0
    %954 = vmatpush1.bf16.msra.mxu0 0
    %955 = vmatprep.subr.bf16.mxu0 0
    %956 = vmatpush1.bf16.msra.mxu0 0
    %957 = vmatprep.subr.bf16.mxu0 0
    %958 = vmatpush1.bf16.msra.mxu0 %v941
    %959 = vmatprep.subr.bf16.mxu0 0
    %960 = vmatpush2.bf16.msra.mxu0 0
    %961 = vmatprep.subr.bf16.mxu0 0
    %962 = vmatpush2.bf16.msra.mxu0 0
    %963 = vmatprep.subr.bf16.mxu0 0
    %964 = vmatpush2.bf16.msra.mxu0 0
    %965 = vmatprep.subr.bf16.mxu0 0
    %966 = vmatpush2.bf16.msra.mxu0 0
    %967 = vmatprep.subr.bf16.mxu0 0
    %968 = vmatpush2.bf16.msra.mxu0 0
    %969 = vmatprep.subr.bf16.mxu0 0
    %970 = vmatpush2.bf16.msra.mxu0 0
    %971 = vmatprep.subr.bf16.mxu0 0
    %972 = vmatpush2.bf16.msra.mxu0 0
    %973 = vmatprep.subr.bf16.mxu0 0
    %974 = vmatpush2.bf16.msra.mxu0 0
    %975 = vmatprep.mubr.bf16.mxu0 0
    %976 = vmatmul.mubr.bf16.gmra.mxu0 %v938
    %v977 = vpop.f32.mrf.mxu0
    %v978 = vadd.f32 0.0, %v977
    %v979 = vpop.f32.mrf.mxu0
    %v980 = vpop.f32.mrf.mxu0
    %v981 = vpop.f32.mrf.mxu0
    %982 = vdwg.mxu0
    %983 = vrot.lane.b32.xlu0 %v188, 64
    %v984 = vpop.permute.xlu0 %983
    %v986 = vsel %vm193, %v692, 0
    %v989 = vsel %vm699, %v984, 0
    %991 = vmatprep.subr.bf16.mxu0 0
    %992 = vmatpush1.bf16.msra.mxu0 0
    %993 = vmatprep.subr.bf16.mxu0 0
    %994 = vmatpush1.bf16.msra.mxu0 0
    %995 = vmatprep.subr.bf16.mxu0 0
    %996 = vmatpush1.bf16.msra.mxu0 0
    %997 = vmatprep.subr.bf16.mxu0 0
    %998 = vmatpush1.bf16.msra.mxu0 0
    %999 = vmatprep.subr.bf16.mxu0 0
    %1000 = vmatpush1.bf16.msra.mxu0 0
    %1001 = vmatprep.subr.bf16.mxu0 0
    %1002 = vmatpush1.bf16.msra.mxu0 0
    %1003 = vmatprep.subr.bf16.mxu0 0
    %1004 = vmatpush1.bf16.msra.mxu0 0
    %1005 = vmatprep.subr.bf16.mxu0 0
    %1006 = vmatpush1.bf16.msra.mxu0 %v989
    %1007 = vmatprep.subr.bf16.mxu0 0
    %1008 = vmatpush2.bf16.msra.mxu0 0
    %1009 = vmatprep.subr.bf16.mxu0 0
    %1010 = vmatpush2.bf16.msra.mxu0 0
    %1011 = vmatprep.subr.bf16.mxu0 0
    %1012 = vmatpush2.bf16.msra.mxu0 0
    %1013 = vmatprep.subr.bf16.mxu0 0
    %1014 = vmatpush2.bf16.msra.mxu0 0
    %1015 = vmatprep.subr.bf16.mxu0 0
    %1016 = vmatpush2.bf16.msra.mxu0 0
    %1017 = vmatprep.subr.bf16.mxu0 0
    %1018 = vmatpush2.bf16.msra.mxu0 0
    %1019 = vmatprep.subr.bf16.mxu0 0
    %1020 = vmatpush2.bf16.msra.mxu0 0
    %1021 = vmatprep.subr.bf16.mxu0 0
    %1022 = vmatpush2.bf16.msra.mxu0 0
    %1023 = vmatprep.mubr.bf16.mxu0 0
    %1024 = vmatmul.mubr.bf16.gmra.mxu0 %v986
    %v1025 = vpop.f32.mrf.mxu0
    %v1026 = vadd.f32 0.0, %v1025
    %v1027 = vpop.f32.mrf.mxu0
    %v1028 = vpop.f32.mrf.mxu0
    %v1029 = vpop.f32.mrf.mxu0
    %1030 = vdwg.mxu0
    %1031 = vrot.lane.b32.xlu0 %v189, 64
    %v1032 = vpop.permute.xlu0 %1031
    %v1034 = vsel %vm193, %v693, 0
    %v1037 = vsel %vm699, %v1032, 0
    %1039 = vmatprep.subr.bf16.mxu0 0
    %1040 = vmatpush1.bf16.msra.mxu0 0
    %1041 = vmatprep.subr.bf16.mxu0 0
    %1042 = vmatpush1.bf16.msra.mxu0 0
    %1043 = vmatprep.subr.bf16.mxu0 0
    %1044 = vmatpush1.bf16.msra.mxu0 0
    %1045 = vmatprep.subr.bf16.mxu0 0
    %1046 = vmatpush1.bf16.msra.mxu0 0
    %1047 = vmatprep.subr.bf16.mxu0 0
    %1048 = vmatpush1.bf16.msra.mxu0 0
    %1049 = vmatprep.subr.bf16.mxu0 0
    %1050 = vmatpush1.bf16.msra.mxu0 0
    %1051 = vmatprep.subr.bf16.mxu0 0
    %1052 = vmatpush1.bf16.msra.mxu0 0
    %1053 = vmatprep.subr.bf16.mxu0 0
    %1054 = vmatpush1.bf16.msra.mxu0 %v1037
    %1055 = vmatprep.subr.bf16.mxu0 0
    %1056 = vmatpush2.bf16.msra.mxu0 0
    %1057 = vmatprep.subr.bf16.mxu0 0
    %1058 = vmatpush2.bf16.msra.mxu0 0
    %1059 = vmatprep.subr.bf16.mxu0 0
    %1060 = vmatpush2.bf16.msra.mxu0 0
    %1061 = vmatprep.subr.bf16.mxu0 0
    %1062 = vmatpush2.bf16.msra.mxu0 0
    %1063 = vmatprep.subr.bf16.mxu0 0
    %1064 = vmatpush2.bf16.msra.mxu0 0
    %1065 = vmatprep.subr.bf16.mxu0 0
    %1066 = vmatpush2.bf16.msra.mxu0 0
    %1067 = vmatprep.subr.bf16.mxu0 0
    %1068 = vmatpush2.bf16.msra.mxu0 0
    %1069 = vmatprep.subr.bf16.mxu0 0
    %1070 = vmatpush2.bf16.msra.mxu0 0
    %1071 = vmatprep.mubr.bf16.mxu0 0
    %1072 = vmatmul.mubr.bf16.gmra.mxu0 %v1034
    %v1073 = vpop.f32.mrf.mxu0
    %v1074 = vadd.f32 0.0, %v1073
    %v1075 = vpop.f32.mrf.mxu0
    %v1076 = vpop.f32.mrf.mxu0
    %v1077 = vpop.f32.mrf.mxu0
    %1078 = vdwg.mxu0
    %1080 = vrot.lane.b32.xlu0 %v786, 8
    %v1081 = vpop.permute.xlu0 %1080
    %1084 = vrot.lane.b32.xlu0 %v834, 16
    %v1085 = vpop.permute.xlu0 %1084
    %1088 = vrot.lane.b32.xlu0 %v882, 24
    %v1089 = vpop.permute.xlu0 %1088
    %v1091 = vsel %vm193, %v738, %v1081
    %vm1092 = vcmask 130048
    %v1093 = vsel %vm1092, %v1091, %v1085
    %vm1094 = vcmask 195584
    %v1095 = vsel %vm1094, %v1093, %v1089
    %1097 = vrot.lane.b32.xlu0 %v978, 8
    %v1098 = vpop.permute.xlu0 %1097
    %1101 = vrot.lane.b32.xlu0 %v1026, 16
    %v1102 = vpop.permute.xlu0 %1101
    %1105 = vrot.lane.b32.xlu0 %v1074, 24
    %v1106 = vpop.permute.xlu0 %1105
    %v1108 = vsel %vm193, %v930, %v1098
    %v1109 = vsel %vm1092, %v1108, %v1102
    %v1110 = vsel %vm1094, %v1109, %v1106
    %v1111 = vpack.c.bf16 %v1110, %v1095
    %v1112 = vld [vmem:[%s5] sm:$0xf]
    %v1113 = vld [vmem:[%s5 + $0x4] sm:$0xf]
    %v1114 = vld [vmem:[%s5 + $0x8] sm:$0xf]
    %v1115 = vld [vmem:[%s5 + $0xc] sm:$0xf]
    %v1116 = vld [vmem:[%s6] sm:$0x1]
    %v1118 = vlaneseq
    %v1119 = vshrl.u32 %v1118, 7
    %v1120 = vsub.s32 0, %v1119
    %v1121 = vrot.slane %v1116, %v1120
    %v1127 = vunpack.c.l.b16 %v1112
    %v1128 = vunpack.c.l.b16 %v1113
    %v1129 = vunpack.c.l.b16 %v1114
    %v1130 = vunpack.c.l.b16 %v1115
    %v1131 = vpack.c.b16 %v1128, %v1127
    %v1132 = vpack.c.b16 %v1130, %v1129
    %v1136 = vsel %vm48, %v1111, 0
    %1138 = vmatprep.subr.bf16.mxu0 0
    %1139 = vmatpush1.bf16.msra.mxu0 0
    %1140 = vmatprep.subr.bf16.mxu0 0
    %1141 = vmatpush1.bf16.msra.mxu0 0
    %1142 = vmatprep.subr.bf16.mxu0 0
    %1143 = vmatpush1.bf16.msra.mxu0 0
    %1144 = vmatprep.subr.bf16.mxu0 0
    %1145 = vmatpush1.bf16.msra.mxu0 0
    %1146 = vmatprep.subr.bf16.mxu0 0
    %1147 = vmatpush1.bf16.msra.mxu0 0
    %1148 = vmatprep.subr.bf16.mxu0 0
    %1149 = vmatpush1.bf16.msra.mxu0 0
    %1150 = vmatprep.subr.bf16.mxu0 0
    %1151 = vmatpush1.bf16.msra.mxu0 %v1132
    %1152 = vmatprep.subr.bf16.mxu0 0
    %1153 = vmatpush1.bf16.msra.mxu0 %v1131
    %1154 = vmatprep.subr.bf16.mxu0 0
    %1155 = vmatpush2.bf16.msra.mxu0 0
    %1156 = vmatprep.subr.bf16.mxu0 0
    %1157 = vmatpush2.bf16.msra.mxu0 0
    %1158 = vmatprep.subr.bf16.mxu0 0
    %1159 = vmatpush2.bf16.msra.mxu0 0
    %1160 = vmatprep.subr.bf16.mxu0 0
    %1161 = vmatpush2.bf16.msra.mxu0 0
    %1162 = vmatprep.subr.bf16.mxu0 0
    %1163 = vmatpush2.bf16.msra.mxu0 0
    %1164 = vmatprep.subr.bf16.mxu0 0
    %1165 = vmatpush2.bf16.msra.mxu0 0
    %1166 = vmatprep.subr.bf16.mxu0 0
    %1167 = vmatpush2.bf16.msra.mxu0 0
    %1168 = vmatprep.subr.bf16.mxu0 0
    %1169 = vmatpush2.bf16.msra.mxu0 0
    %1170 = vmatprep.mubr.bf16.mxu0 0
    %1171 = vmatmul.mubr.bf16.gmra.mxu0 %v1136
    %v1172 = vpop.f32.mrf.mxu0
    %v1173 = vadd.f32 %v1121, %v1172
    %v1174 = vpop.f32.mrf.mxu0
    %v1175 = vpop.f32.mrf.mxu0
    %v1176 = vadd.f32 %v1121, %v1175
    %v1177 = vpop.f32.mrf.mxu0
    %1178 = vdwg.mxu0
    %v1179 = vadd.f32 %v46, %v1173
    %v1180 = vadd.f32 %v47, %v1176
    %v1181 = vsel %vm48, %v1179, 0.0
    %1182 = vadd.xlane.f32.xlu0 %v1181
    %v1183 = vpop.xlane.xlu0 %1182
    %v1184 = vsel %vm48, %v1180, 0.0
    %1185 = vadd.xlane.f32.xlu0 %v1184
    %v1186 = vpop.xlane.xlu0 %1185
    %v1187 = vmul.f32 %v1183, %v55
    %v1188 = vmul.f32 %v1186, %v55
    %v1189 = vsub.f32 %v1179, %v1187
    %v1190 = vsub.f32 %v1180, %v1188
    %v1191 = vmul.f32 %v1189, %v1189
    %v1192 = vmul.f32 %v1190, %v1190
    %v1193 = vsel %vm48, %v1191, 0.0
    %1194 = vadd.xlane.f32.xlu0 %v1193
    %v1195 = vpop.xlane.xlu0 %1194
    %v1196 = vsel %vm48, %v1192, 0.0
    %1197 = vadd.xlane.f32.xlu0 %v1196
    %v1198 = vpop.xlane.xlu0 %1197
    %v1199 = vmul.f32 %v1195, %v55
    %v1200 = vmul.f32 %v1198, %v55
    %v1201 = vadd.f32 %v1199, 1e-05
    %v1202 = vadd.f32 %v1200, 1e-05
    %v1203 = vrsqrt.pop %v1201
    %v1204 = vrsqrt.pop %v1202
    %v1205 = vmul.f32 %v1189, %v1203
    %v1206 = vmul.f32 %v1190, %v1204
    %v1207 = vld [vmem:[%s7] sm:$0x1]
    %v1209 = vlaneseq
    %v1210 = vshrl.u32 %v1209, 7
    %v1211 = vsub.s32 0, %v1210
    %v1212 = vrot.slane %v1207, %v1211
    %v1214 = vmul.f32 %v1205, %v1212
    %v1215 = vmul.f32 %v1206, %v1212
    %v1216 = vld [vmem:[%s8] sm:$0x1]
    %v1218 = vlaneseq
    %v1219 = vshrl.u32 %v1218, 7
    %v1220 = vsub.s32 0, %v1219
    %v1221 = vrot.slane %v1216, %v1220
    %v1223 = vadd.f32 %v1214, %v1221
    %v1224 = vadd.f32 %v1215, %v1221
    %v1225 = vpack.c.bf16 %v1224, %v1223
    %v1226 = vld [vmem:[%s9] sm:$0xf]
    %v1227 = vld [vmem:[%s9 + $0x4] sm:$0xf]
    %v1228 = vld [vmem:[%s9 + $0x8] sm:$0xf]
    %v1229 = vld [vmem:[%s9 + $0xc] sm:$0xf]
    %v1230 = vld [vmem:[%s10] sm:$0x1]
    %v1232 = vlaneseq
    %v1233 = vshrl.u32 %v1232, 7
    %v1234 = vsub.s32 0, %v1233
    %v1235 = vrot.slane %v1230, %v1234
    %v1241 = vunpack.c.l.b16 %v1226
    %v1242 = vunpack.c.l.b16 %v1227
    %v1243 = vunpack.c.l.b16 %v1228
    %v1244 = vunpack.c.l.b16 %v1229
    %v1245 = vpack.c.b16 %v1242, %v1241
    %v1246 = vpack.c.b16 %v1244, %v1243
    %v1250 = vsel %vm48, %v1225, 0
    %1252 = vmatprep.subr.bf16.mxu0 0
    %1253 = vmatpush1.bf16.msra.mxu0 0
    %1254 = vmatprep.subr.bf16.mxu0 0
    %1255 = vmatpush1.bf16.msra.mxu0 0
    %1256 = vmatprep.subr.bf16.mxu0 0
    %1257 = vmatpush1.bf16.msra.mxu0 0
    %1258 = vmatprep.subr.bf16.mxu0 0
    %1259 = vmatpush1.bf16.msra.mxu0 0
    %1260 = vmatprep.subr.bf16.mxu0 0
    %1261 = vmatpush1.bf16.msra.mxu0 0
    %1262 = vmatprep.subr.bf16.mxu0 0
    %1263 = vmatpush1.bf16.msra.mxu0 0
    %1264 = vmatprep.subr.bf16.mxu0 0
    %1265 = vmatpush1.bf16.msra.mxu0 %v1246
    %1266 = vmatprep.subr.bf16.mxu0 0
    %1267 = vmatpush1.bf16.msra.mxu0 %v1245
    %1268 = vmatprep.subr.bf16.mxu0 0
    %1269 = vmatpush2.bf16.msra.mxu0 0
    %1270 = vmatprep.subr.bf16.mxu0 0
    %1271 = vmatpush2.bf16.msra.mxu0 0
    %1272 = vmatprep.subr.bf16.mxu0 0
    %1273 = vmatpush2.bf16.msra.mxu0 0
    %1274 = vmatprep.subr.bf16.mxu0 0
    %1275 = vmatpush2.bf16.msra.mxu0 0
    %1276 = vmatprep.subr.bf16.mxu0 0
    %1277 = vmatpush2.bf16.msra.mxu0 0
    %1278 = vmatprep.subr.bf16.mxu0 0
    %1279 = vmatpush2.bf16.msra.mxu0 0
    %1280 = vmatprep.subr.bf16.mxu0 0
    %1281 = vmatpush2.bf16.msra.mxu0 0
    %1282 = vmatprep.subr.bf16.mxu0 0
    %1283 = vmatpush2.bf16.msra.mxu0 0
    %1284 = vmatprep.mubr.bf16.mxu0 0
    %1285 = vmatmul.mubr.bf16.gmra.mxu0 %v1250
    %v1286 = vpop.f32.mrf.mxu0
    %v1287 = vadd.f32 %v1235, %v1286
    %v1288 = vpop.f32.mrf.mxu0
    %v1289 = vpop.f32.mrf.mxu0
    %v1290 = vadd.f32 %v1235, %v1289
    %v1291 = vpop.f32.mrf.mxu0
    %1292 = vdwg.mxu0
    %v1293 = vmul.f32 %v1287, 0.5
    %v1294 = vmul.f32 %v1290, 0.5
    %v1295 = vmul.f32 %v1287, 0.044715
    %v1296 = vmul.f32 %v1290, 0.044715
    %v1297 = vmul.f32 %v1295, %v1287
    %v1298 = vmul.f32 %v1296, %v1290
    %v1299 = vmul.f32 %v1297, %v1287
    %v1300 = vmul.f32 %v1298, %v1290
    %v1301 = vadd.f32 %v1287, %v1299
    %v1302 = vadd.f32 %v1290, %v1300
    %v1303 = vmul.f32 %v1301, 0.7978846
    %v1304 = vmul.f32 %v1302, 0.7978846
    %v1305 = vtanh.pop %v1303
    %v1306 = vtanh.pop %v1304
    %v1307 = vadd.f32 %v1305, 1.0
    %v1308 = vadd.f32 %v1306, 1.0
    %v1309 = vmul.f32 %v1293, %v1307
    %v1310 = vmul.f32 %v1294, %v1308
    %v1311 = vpack.c.bf16 %v1310, %v1309
    %v1312 = vld [vmem:[%s11] sm:$0xf]
    %v1313 = vld [vmem:[%s11 + $0x4] sm:$0xf]
    %v1314 = vld [vmem:[%s11 + $0x8] sm:$0xf]
    %v1315 = vld [vmem:[%s11 + $0xc] sm:$0xf]
    %v1316 = vld [vmem:[%s11 + $0x10] sm:$0xf]
    %v1317 = vld [vmem:[%s11 + $0x14] sm:$0xf]
    %v1318 = vld [vmem:[%s11 + $0x18] sm:$0xf]
    %v1319 = vld [vmem:[%s11 + $0x1c] sm:$0xf]
    %v1320 = vld [vmem:[%s11 + $0x20] sm:$0xf]
    %v1321 = vld [vmem:[%s11 + $0x24] sm:$0xf]
    %v1322 = vld [vmem:[%s11 + $0x28] sm:$0xf]
    %v1323 = vld [vmem:[%s11 + $0x2c] sm:$0xf]
    %v1324 = vld [vmem:[%s11 + $0x30] sm:$0xf]
    %v1325 = vld [vmem:[%s11 + $0x34] sm:$0xf]
    %v1326 = vld [vmem:[%s11 + $0x38] sm:$0xf]
    %v1327 = vld [vmem:[%s11 + $0x3c] sm:$0xf]
    %v1328 = vld [vmem:[%s12] sm:$0x1]
    %v1330 = vlaneseq
    %v1331 = vshrl.u32 %v1330, 7
    %v1332 = vsub.s32 0, %v1331
    %v1333 = vrot.slane %v1328, %v1332
    %v1351 = vunpack.c.l.b16 %v1312
    %v1352 = vunpack.c.l.b16 %v1313
    %v1353 = vunpack.c.l.b16 %v1314
    %v1354 = vunpack.c.l.b16 %v1315
    %v1355 = vunpack.c.l.b16 %v1316
    %v1356 = vunpack.c.l.b16 %v1317
    %v1357 = vunpack.c.l.b16 %v1318
    %v1358 = vunpack.c.l.b16 %v1319
    %v1359 = vunpack.c.l.b16 %v1320
    %v1360 = vunpack.c.l.b16 %v1321
    %v1361 = vunpack.c.l.b16 %v1322
    %v1362 = vunpack.c.l.b16 %v1323
    %v1363 = vunpack.c.l.b16 %v1324
    %v1364 = vunpack.c.l.b16 %v1325
    %v1365 = vunpack.c.l.b16 %v1326
    %v1366 = vunpack.c.l.b16 %v1327
    %v1367 = vpack.c.b16 %v1352, %v1351
    %v1368 = vpack.c.b16 %v1354, %v1353
    %v1369 = vpack.c.b16 %v1356, %v1355
    %v1370 = vpack.c.b16 %v1358, %v1357
    %v1371 = vpack.c.b16 %v1360, %v1359
    %v1372 = vpack.c.b16 %v1362, %v1361
    %v1373 = vpack.c.b16 %v1364, %v1363
    %v1374 = vpack.c.b16 %v1366, %v1365
    %1383 = vmatprep.subr.bf16.mxu0 0
    %1384 = vmatpush1.bf16.msra.mxu0 %v1374
    %1385 = vmatprep.subr.bf16.mxu0 0
    %1386 = vmatpush1.bf16.msra.mxu0 %v1373
    %1387 = vmatprep.subr.bf16.mxu0 0
    %1388 = vmatpush1.bf16.msra.mxu0 %v1372
    %1389 = vmatprep.subr.bf16.mxu0 0
    %1390 = vmatpush1.bf16.msra.mxu0 %v1371
    %1391 = vmatprep.subr.bf16.mxu0 0
    %1392 = vmatpush1.bf16.msra.mxu0 %v1370
    %1393 = vmatprep.subr.bf16.mxu0 0
    %1394 = vmatpush1.bf16.msra.mxu0 %v1369
    %1395 = vmatprep.subr.bf16.mxu0 0
    %1396 = vmatpush1.bf16.msra.mxu0 %v1368
    %1397 = vmatprep.subr.bf16.mxu0 0
    %1398 = vmatpush1.bf16.msra.mxu0 %v1367
    %1399 = vmatprep.subr.bf16.mxu0 0
    %1400 = vmatpush2.bf16.msra.mxu0 0
    %1401 = vmatprep.subr.bf16.mxu0 0
    %1402 = vmatpush2.bf16.msra.mxu0 0
    %1403 = vmatprep.subr.bf16.mxu0 0
    %1404 = vmatpush2.bf16.msra.mxu0 0
    %1405 = vmatprep.subr.bf16.mxu0 0
    %1406 = vmatpush2.bf16.msra.mxu0 0
    %1407 = vmatprep.subr.bf16.mxu0 0
    %1408 = vmatpush2.bf16.msra.mxu0 0
    %1409 = vmatprep.subr.bf16.mxu0 0
    %1410 = vmatpush2.bf16.msra.mxu0 0
    %1411 = vmatprep.subr.bf16.mxu0 0
    %1412 = vmatpush2.bf16.msra.mxu0 0
    %1413 = vmatprep.subr.bf16.mxu0 0
    %1414 = vmatpush2.bf16.msra.mxu0 0
    %1415 = vmatprep.mubr.bf16.mxu0 0
    %1416 = vmatmul.mubr.bf16.gmra.mxu0 %v1311
    %v1417 = vpop.f32.mrf.mxu0
    %v1418 = vadd.f32 %v1333, %v1417
    %v1419 = vpop.f32.mrf.mxu0
    %v1420 = vpop.f32.mrf.mxu0
    %v1421 = vadd.f32 %v1333, %v1420
    %v1422 = vpop.f32.mrf.mxu0
    %1423 = vdwg.mxu0
    %v1424 = vadd.f32 %v1179, %v1418
    %v1425 = vadd.f32 %v1180, %v1421
    %1426 = vst.msk [vmem:[#allocation2] sm:$0xff] %vm48, %v1424
    %1427 = vst.msk [vmem:[#allocation2 + $0x8] sm:$0xff] %vm48, %v1425
    // Predicated region
    $region54: #{tpu_custom_call.1} parent=1 // pred_check
      _
    $region55: #{tpu_custom_call.1} parent=1 // pred_check_branch
      %1429 = sbr.rel (0) target = $region57
    $region56: #{tpu_custom_call.1} parent=1 // pred_region
      %s1431 = ssub.s32 256, 256
      %1432 = vsyncadd [#allocation3], %s1431
      %s1433 = sshll.u32 [#allocation2], 4
      %s1434 = int_to_ptr.vmem [resolvable:$true] %s1433
      %1439 = dma.vmem_to_hbm [thread:$0]  %s1434, 256, %s13, [#allocation3], 128, 128, 8
    $region57: #{tpu_custom_call.1} parent=1 // pred_fallthru
      _
    // Predicated region
    $region58: #{tpu_custom_call.1} parent=1 // pred_check
      _
    $region59: #{tpu_custom_call.1} parent=1 // pred_check_branch
      %1441 = sbr.rel (0) target = $region61
    $region60: #{tpu_custom_call.1} parent=1 // pred_region
      %1442 = dma.done [#allocation3], 256
    $region61: #{tpu_custom_call.1} parent=1 // pred_fallthru
      _
    %1443 = vsyncpa [#allocation3], 1

</llo_original>
